<compile_context>
chip_gen: v7x
topology: tpu7x:2x2x1
jax: 0.10.0
libtpu: 0.0.40
codegen_flags: <defaults>
</compile_context>

<pallas_src>
import jax
import jax.numpy as jnp
from jax import lax
from jax.experimental import pallas as pl
from jax.experimental.pallas import tpu as pltpu

# ---- small, module-consistent hyperparameters ----
VOCAB_SIZE = 100
EMBEDDING_DIM = 32
HIDDEN_DIM = 32
N_LAYERS = 2
OUTPUT_SIZE = 1
BATCH = 2
SEQ_LEN = 8

# bf16 matmul operands hit the native MXU path on v5e/v6e/v7x; accumulation stays f32.
MATMUL_DTYPE = jnp.bfloat16

_VMEM = pl.BlockSpec(memory_space=pltpu.MemorySpace.VMEM)
_SMEM = pl.BlockSpec(memory_space=pltpu.MemorySpace.SMEM)


# ------------------------------------------------------------------
# Fused Pallas kernel: in-kernel embedding/projection gather + 2-layer
# LSTM recurrence + fc + sigmoid head
# ------------------------------------------------------------------
def fused_sentiment_lstm_kernel(ids_ref, ptab_ref, whh0_ref, b0_ref,
                                wih1_ref, whh1_ref, b1_ref,
                                h0_ref, c0_ref, wfc_ref, bfc_ref,
                                sig_ref, hT_ref, cT_ref):
    """
    ids_ref : (B, T)  int32       token ids (SMEM)
    ptab_ref: (Vpad, 4H) f32      folded projection table  embedding @ W_ih_l0^T
    whh0_ref: (H, 4H)  MATMUL_DT  W_hh_l0^T
    b0_ref  : (1, 4H)  f32        b_ih_l0 + b_hh_l0
    wih1_ref: (H, 4H)  MATMUL_DT  W_ih_l1^T
    whh1_ref: (H, 4H)  MATMUL_DT  W_hh_l1^T
    b1_ref  : (1, 4H)  f32        b_ih_l1 + b_hh_l1
    h0_ref  : (n_layers, B, H)    initial hidden
    c0_ref  : (n_layers, B, H)    initial cell
    wfc_ref : (1, H)   f32        fc weight row
    bfc_ref : (1, 1)   f32        fc bias
    sig_ref : (B, 1)              sigmoid(fc(h_top at t = T-1))
    hT_ref  : (n_layers, B, H)    final hidden
    cT_ref  : (n_layers, B, H)    final cell
    """
    B = ids_ref.shape[0]
    T = ids_ref.shape[1]
    H = hT_ref.shape[-1]

    # Hoist weight / bias loads out of the time loop (a handful of vregs, kept live).
    whh0 = whh0_ref[...]
    wih1 = wih1_ref[...]
    whh1 = whh1_ref[...]
    b0 = jnp.broadcast_to(b0_ref[...], (B, 4 * H))   # broadcast once, not per step
    b1 = jnp.broadcast_to(b1_ref[...], (B, 4 * H))

    def gates_to_hc(gates, c):
        # PyTorch gate order i, f, g, o; one full-width sigmoid + one tanh on the g slice.
        sig_all = jax.nn.sigmoid(gates)
        g = jnp.tanh(gates[:, 2 * H:3 * H])
        i = sig_all[:, 0 * H:1 * H]
        f = sig_all[:, 1 * H:2 * H]
        o = sig_all[:, 3 * H:4 * H]
        c_new = f * c + i * g
        h_new = o * jnp.tanh(c_new)
        return h_new, c_new

    def mm(a, w):
        # bf16 (or f32) MXU operands, f32 accumulation; elementwise math stays f32.
        return jnp.dot(a.astype(w.dtype), w, preferred_element_type=jnp.float32)

    def step(t, carry):
        h0, c0, h1, c1 = carry
        # layer 0: embedding lookup + x @ W_ih_l0^T is a single pre-folded table-row gather.
        rows = [ptab_ref[pl.ds(ids_ref[b, t], 1), :] for b in range(B)]
        xproj = jnp.concatenate(rows, axis=0) if B > 1 else rows[0]     # (B, 4H)
        gates0 = xproj + mm(h0, whh0) + b0
        h0, c0 = gates_to_hc(gates0, c0)
        # layer 1: split matmuls, no per-step concat.
        # Inter-layer LSTM dropout(p=0.5) is identity in eval mode.
        gates1 = mm(h0, wih1) + mm(h1, whh1) + b1
        h1, c1 = gates_to_hc(gates1, c1)
        return (h0, c0, h1, c1)

    init = (h0_ref[0], c0_ref[0], h0_ref[1], c0_ref[1])
    h0_f, c0_f, h1_f, c1_f = lax.fori_loop(0, T, step, init, unroll=True)

    # nn.Dropout(0.3) -> identity in eval mode.
    # Head only on the last timestep of the top layer == sig_out.view(B, -1)[:, -1] in PyTorch.
    # N=1 output: VPU multiply + lane reduce (keeps the MXU off the kernel tail).
    logits = jnp.sum(h1_f * wfc_ref[...], axis=-1, keepdims=True) + bfc_ref[...]
    sig_ref[...] = jax.nn.sigmoid(logits)

    hT_ref[0] = h0_f
    hT_ref[1] = h1_f
    cT_ref[0] = c0_f
    cT_ref[1] = c1_f


# ------------------------------------------------------------------
# Wrapper (no embedding gather / transpose outside the kernel anymore)
# ------------------------------------------------------------------
def sentiment_lstm_forward(x_tokens, hidden, params):
    """x_tokens: (B, T) int32 token ids; hidden = (h0, c0) each (n_layers, B, H)."""
    B, T = x_tokens.shape
    h0_all, c0_all = hidden

    sig, hT, cT = pl.pallas_call(
        fused_sentiment_lstm_kernel,
        out_shape=(jax.ShapeDtypeStruct((B, OUTPUT_SIZE), jnp.float32),
                   jax.ShapeDtypeStruct((N_LAYERS, B, HIDDEN_DIM), jnp.float32),
                   jax.ShapeDtypeStruct((N_LAYERS, B, HIDDEN_DIM), jnp.float32)),
        in_specs=[_SMEM] + [_VMEM] * 10,
        out_specs=(_VMEM, _VMEM, _VMEM),
    )(x_tokens.astype(jnp.int32),
      params["ptab"],
      params["w_hh0"], params["b0"],
      params["w_ih1"], params["w_hh1"], params["b1"],
      h0_all, c0_all,
      params["w_fc"], params["b_fc"])

    sig_out = sig[:, 0]                                        # (B,)
    return sig_out, (hT, cT)


# ------------------------------------------------------------------
# Parameter init (PyTorch layout) + one-time re-layout for the kernel
# ------------------------------------------------------------------
def init_params(key):
    ks = jax.random.split(key, 16)
    k = iter(ks)
    scale = 1.0 / jnp.sqrt(jnp.float32(HIDDEN_DIM))
    p = {}
    p["embedding"] = jax.random.normal(next(k), (VOCAB_SIZE, EMBEDDING_DIM), jnp.float32) * 0.1
    for l in range(N_LAYERS):
        in_dim = EMBEDDING_DIM if l == 0 else HIDDEN_DIM
        p[f"w_ih_l{l}"] = jax.random.uniform(next(k), (4 * HIDDEN_DIM, in_dim), jnp.float32,
                                             -scale, scale)
        p[f"w_hh_l{l}"] = jax.random.uniform(next(k), (4 * HIDDEN_DIM, HIDDEN_DIM), jnp.float32,
                                             -scale, scale)
        p[f"b_ih_l{l}"] = jax.random.uniform(next(k), (4 * HIDDEN_DIM,), jnp.float32, -scale, scale)
        p[f"b_hh_l{l}"] = jax.random.uniform(next(k), (4 * HIDDEN_DIM,), jnp.float32, -scale, scale)
    p["w_fc"] = jax.random.uniform(next(k), (OUTPUT_SIZE, HIDDEN_DIM), jnp.float32, -scale, scale)
    p["b_fc"] = jax.random.uniform(next(k), (OUTPUT_SIZE,), jnp.float32, -scale, scale)
    return p


def prepare_params(p):
    """One-time re-layout: fold the layer-0 input projection into the embedding table,
    transpose/split the recurrent weights (bf16 matmul operands), sum the biases."""
    out = {}
    # Folded projection table: P = embedding @ W_ih_l0^T  -> (VOCAB, 4H), padded to 8 rows.
    ptab = jnp.dot(p["embedding"], jnp.transpose(p["w_ih_l0"]),
                   preferred_element_type=jnp.float32)
    vpad = ((VOCAB_SIZE + 7) // 8) * 8
    out["ptab"] = jnp.pad(ptab, ((0, vpad - VOCAB_SIZE), (0, 0)))
    out["w_hh0"] = jnp.transpose(p["w_hh_l0"]).astype(MATMUL_DTYPE)     # (H, 4H)
    out["b0"] = (p["b_ih_l0"] + p["b_hh_l0"]).reshape(1, 4 * HIDDEN_DIM)
    out["w_ih1"] = jnp.transpose(p["w_ih_l1"]).astype(MATMUL_DTYPE)     # (H, 4H)
    out["w_hh1"] = jnp.transpose(p["w_hh_l1"]).astype(MATMUL_DTYPE)     # (H, 4H)
    out["b1"] = (p["b_ih_l1"] + p["b_hh_l1"]).reshape(1, 4 * HIDDEN_DIM)
    out["w_fc"] = p["w_fc"]                                             # (1, H) row, VPU reduce
    out["b_fc"] = p["b_fc"].reshape(1, OUTPUT_SIZE)
    return out


if __name__ == "__main__":
    key = jax.random.PRNGKey(0)
    k_tok, k_par = jax.random.split(key)

    x_tokens = jax.random.randint(k_tok, (BATCH, SEQ_LEN), 0, VOCAB_SIZE, dtype=jnp.int32)
    params = prepare_params(init_params(k_par))

    # init_hidden: zeros
    hidden = (jnp.zeros((N_LAYERS, BATCH, HIDDEN_DIM), jnp.float32),
              jnp.zeros((N_LAYERS, BATCH, HIDDEN_DIM), jnp.float32))

    sig_out, hidden_out = jax.jit(sentiment_lstm_forward)(x_tokens, hidden, params)
    jax.block_until_ready((sig_out, hidden_out))

    assert sig_out.shape == (BATCH,)
    assert hidden_out[0].shape == (N_LAYERS, BATCH, HIDDEN_DIM)
    assert hidden_out[1].shape == (N_LAYERS, BATCH, HIDDEN_DIM)
    print("KERNEL_OK")
</pallas_src>

<mosaic_0001>
module attributes {stable_mosaic.version = 11 : i64} {
  func.func @fused_sentiment_lstm_kernel(%arg0: memref<2x8xi32, #tpu.memory_space<smem>>, %arg1: memref<104x128xf32, #tpu.memory_space<vmem>>, %arg2: memref<32x128xbf16, #tpu.memory_space<vmem>>, %arg3: memref<1x128xf32, #tpu.memory_space<vmem>>, %arg4: memref<32x128xbf16, #tpu.memory_space<vmem>>, %arg5: memref<32x128xbf16, #tpu.memory_space<vmem>>, %arg6: memref<1x128xf32, #tpu.memory_space<vmem>>, %arg7: memref<2x2x32xf32, #tpu.memory_space<vmem>>, %arg8: memref<2x2x32xf32, #tpu.memory_space<vmem>>, %arg9: memref<1x32xf32, #tpu.memory_space<vmem>>, %arg10: memref<1x1xf32, #tpu.memory_space<vmem>>, %arg11: memref<2x1xf32, #tpu.memory_space<vmem>>, %arg12: memref<2x2x32xf32, #tpu.memory_space<vmem>>, %arg13: memref<2x2x32xf32, #tpu.memory_space<vmem>>) attributes {dimension_semantics = [], scalar_prefetch = 0 : i64, scratch_operands = 0 : i64, tpu.core_type = #tpu.core_type<tc>} {
    %c0 = arith.constant 0 : index
    %c0_0 = arith.constant 0 : index
    %0 = vector.load %arg2[%c0, %c0_0] : memref<32x128xbf16, #tpu.memory_space<vmem>>, vector<32x128xbf16>
    %c0_1 = arith.constant 0 : index
    %c0_2 = arith.constant 0 : index
    %1 = vector.load %arg4[%c0_1, %c0_2] : memref<32x128xbf16, #tpu.memory_space<vmem>>, vector<32x128xbf16>
    %c0_3 = arith.constant 0 : index
    %c0_4 = arith.constant 0 : index
    %2 = vector.load %arg5[%c0_3, %c0_4] : memref<32x128xbf16, #tpu.memory_space<vmem>>, vector<32x128xbf16>
    %c0_5 = arith.constant 0 : index
    %c0_6 = arith.constant 0 : index
    %3 = vector.load %arg3[%c0_5, %c0_6] : memref<1x128xf32, #tpu.memory_space<vmem>>, vector<1x128xf32>
    %4 = vector.shape_cast %3 : vector<1x128xf32> to vector<1x128xf32>
    %5 = vector.broadcast %4 : vector<1x128xf32> to vector<2x128xf32>
    %c0_7 = arith.constant 0 : index
    %c0_8 = arith.constant 0 : index
    %6 = vector.load %arg6[%c0_7, %c0_8] : memref<1x128xf32, #tpu.memory_space<vmem>>, vector<1x128xf32>
    %7 = vector.shape_cast %6 : vector<1x128xf32> to vector<1x128xf32>
    %8 = vector.broadcast %7 : vector<1x128xf32> to vector<2x128xf32>
    %c0_9 = arith.constant 0 : index
    %c0_10 = arith.constant 0 : index
    %c0_11 = arith.constant 0 : index
    %9 = vector.load %arg7[%c0_9, %c0_10, %c0_11] : memref<2x2x32xf32, #tpu.memory_space<vmem>>, vector<1x2x32xf32>
    %10 = vector.shape_cast %9 : vector<1x2x32xf32> to vector<2x32xf32>
    %c0_12 = arith.constant 0 : index
    %c0_13 = arith.constant 0 : index
    %c0_14 = arith.constant 0 : index
    %11 = vector.load %arg8[%c0_12, %c0_13, %c0_14] : memref<2x2x32xf32, #tpu.memory_space<vmem>>, vector<1x2x32xf32>
    %12 = vector.shape_cast %11 : vector<1x2x32xf32> to vector<2x32xf32>
    %c1 = arith.constant 1 : index
    %c0_15 = arith.constant 0 : index
    %c0_16 = arith.constant 0 : index
    %13 = vector.load %arg7[%c1, %c0_15, %c0_16] : memref<2x2x32xf32, #tpu.memory_space<vmem>>, vector<1x2x32xf32>
    %14 = vector.shape_cast %13 : vector<1x2x32xf32> to vector<2x32xf32>
    %c1_17 = arith.constant 1 : index
    %c0_18 = arith.constant 0 : index
    %c0_19 = arith.constant 0 : index
    %15 = vector.load %arg8[%c1_17, %c0_18, %c0_19] : memref<2x2x32xf32, #tpu.memory_space<vmem>>, vector<1x2x32xf32>
    %16 = vector.shape_cast %15 : vector<1x2x32xf32> to vector<2x32xf32>
    %c0_i32 = arith.constant 0 : i32
    %c0_20 = arith.constant 0 : index
    %17 = arith.index_cast %c0_i32 : i32 to index
    %18 = memref.load %arg0[%c0_20, %17] : memref<2x8xi32, #tpu.memory_space<smem>>
    %19 = arith.index_cast %18 : i32 to index
    %c0_21 = arith.constant 0 : index
    %20 = vector.load %arg1[%19, %c0_21] : memref<104x128xf32, #tpu.memory_space<vmem>>, vector<1x128xf32>
    %c1_22 = arith.constant 1 : index
    %21 = arith.index_cast %c0_i32 : i32 to index
    %22 = memref.load %arg0[%c1_22, %21] : memref<2x8xi32, #tpu.memory_space<smem>>
    %23 = arith.index_cast %22 : i32 to index
    %c0_23 = arith.constant 0 : index
    %24 = vector.load %arg1[%23, %c0_23] : memref<104x128xf32, #tpu.memory_space<vmem>>, vector<1x128xf32>
    %25 = tpu.concatenate %20, %24 in 0 : vector<1x128xf32>, vector<1x128xf32> -> vector<2x128xf32>
    %26 = arith.truncf %10 : vector<2x32xf32> to vector<2x32xbf16>
    %cst = arith.constant dense<0.000000e+00> : vector<2x128xf32>
    %27 = tpu.matmul %26, %0, %cst {dimension_numbers = #tpu.dot_dimension_numbers<[1], [0], [0], [1], [0, 0, 1, 1], [], []>} : vector<2x32xbf16>, vector<32x128xbf16>, vector<2x128xf32> -> vector<2x128xf32>
    %28 = arith.addf %25, %27 : vector<2x128xf32>
    %29 = arith.addf %28, %5 : vector<2x128xf32>
    %30 = arith.negf %29 : vector<2x128xf32>
    %31 = math.exp %30 : vector<2x128xf32>
    %cst_24 = arith.constant 1.000000e+00 : f32
    %32 = vector.broadcast %cst_24 : f32 to vector<2x128xf32>
    %33 = arith.addf %32, %31 : vector<2x128xf32>
    %34 = arith.divf %32, %33 : vector<2x128xf32>
    %35 = vector.extract_strided_slice %29 {offsets = [0, 64], sizes = [2, 32], strides = [1, 1]} : vector<2x128xf32> to vector<2x32xf32>
    %36 = math.tanh %35 : vector<2x32xf32>
    %37 = vector.extract_strided_slice %34 {offsets = [0, 0], sizes = [2, 32], strides = [1, 1]} : vector<2x128xf32> to vector<2x32xf32>
    %38 = vector.extract_strided_slice %34 {offsets = [0, 32], sizes = [2, 32], strides = [1, 1]} : vector<2x128xf32> to vector<2x32xf32>
    %39 = vector.extract_strided_slice %34 {offsets = [0, 96], sizes = [2, 32], strides = [1, 1]} : vector<2x128xf32> to vector<2x32xf32>
    %40 = arith.mulf %38, %12 : vector<2x32xf32>
    %41 = arith.mulf %37, %36 : vector<2x32xf32>
    %42 = arith.addf %40, %41 : vector<2x32xf32>
    %43 = math.tanh %42 : vector<2x32xf32>
    %44 = arith.mulf %39, %43 : vector<2x32xf32>
    %45 = arith.truncf %44 : vector<2x32xf32> to vector<2x32xbf16>
    %cst_25 = arith.constant dense<0.000000e+00> : vector<2x128xf32>
    %46 = tpu.matmul %45, %1, %cst_25 {dimension_numbers = #tpu.dot_dimension_numbers<[1], [0], [0], [1], [0, 0, 1, 1], [], []>} : vector<2x32xbf16>, vector<32x128xbf16>, vector<2x128xf32> -> vector<2x128xf32>
    %47 = arith.truncf %14 : vector<2x32xf32> to vector<2x32xbf16>
    %cst_26 = arith.constant dense<0.000000e+00> : vector<2x128xf32>
    %48 = tpu.matmul %47, %2, %cst_26 {dimension_numbers = #tpu.dot_dimension_numbers<[1], [0], [0], [1], [0, 0, 1, 1], [], []>} : vector<2x32xbf16>, vector<32x128xbf16>, vector<2x128xf32> -> vector<2x128xf32>
    %49 = arith.addf %46, %48 : vector<2x128xf32>
    %50 = arith.addf %49, %8 : vector<2x128xf32>
    %51 = arith.negf %50 : vector<2x128xf32>
    %52 = math.exp %51 : vector<2x128xf32>
    %cst_27 = arith.constant 1.000000e+00 : f32
    %53 = vector.broadcast %cst_27 : f32 to vector<2x128xf32>
    %54 = arith.addf %53, %52 : vector<2x128xf32>
    %55 = arith.divf %53, %54 : vector<2x128xf32>
    %56 = vector.extract_strided_slice %50 {offsets = [0, 64], sizes = [2, 32], strides = [1, 1]} : vector<2x128xf32> to vector<2x32xf32>
    %57 = math.tanh %56 : vector<2x32xf32>
    %58 = vector.extract_strided_slice %55 {offsets = [0, 0], sizes = [2, 32], strides = [1, 1]} : vector<2x128xf32> to vector<2x32xf32>
    %59 = vector.extract_strided_slice %55 {offsets = [0, 32], sizes = [2, 32], strides = [1, 1]} : vector<2x128xf32> to vector<2x32xf32>
    %60 = vector.extract_strided_slice %55 {offsets = [0, 96], sizes = [2, 32], strides = [1, 1]} : vector<2x128xf32> to vector<2x32xf32>
    %61 = arith.mulf %59, %16 : vector<2x32xf32>
    %62 = arith.mulf %58, %57 : vector<2x32xf32>
    %63 = arith.addf %61, %62 : vector<2x32xf32>
    %64 = math.tanh %63 : vector<2x32xf32>
    %65 = arith.mulf %60, %64 : vector<2x32xf32>
    %c1_i32 = arith.constant 1 : i32
    %c0_28 = arith.constant 0 : index
    %66 = arith.index_cast %c1_i32 : i32 to index
    %67 = memref.load %arg0[%c0_28, %66] : memref<2x8xi32, #tpu.memory_space<smem>>
    %68 = arith.index_cast %67 : i32 to index
    %c0_29 = arith.constant 0 : index
    %69 = vector.load %arg1[%68, %c0_29] : memref<104x128xf32, #tpu.memory_space<vmem>>, vector<1x128xf32>
    %c1_30 = arith.constant 1 : index
    %70 = arith.index_cast %c1_i32 : i32 to index
    %71 = memref.load %arg0[%c1_30, %70] : memref<2x8xi32, #tpu.memory_space<smem>>
    %72 = arith.index_cast %71 : i32 to index
    %c0_31 = arith.constant 0 : index
    %73 = vector.load %arg1[%72, %c0_31] : memref<104x128xf32, #tpu.memory_space<vmem>>, vector<1x128xf32>
    %74 = tpu.concatenate %69, %73 in 0 : vector<1x128xf32>, vector<1x128xf32> -> vector<2x128xf32>
    %75 = arith.truncf %44 : vector<2x32xf32> to vector<2x32xbf16>
    %cst_32 = arith.constant dense<0.000000e+00> : vector<2x128xf32>
    %76 = tpu.matmul %75, %0, %cst_32 {dimension_numbers = #tpu.dot_dimension_numbers<[1], [0], [0], [1], [0, 0, 1, 1], [], []>} : vector<2x32xbf16>, vector<32x128xbf16>, vector<2x128xf32> -> vector<2x128xf32>
    %77 = arith.addf %74, %76 : vector<2x128xf32>
    %78 = arith.addf %77, %5 : vector<2x128xf32>
    %79 = arith.negf %78 : vector<2x128xf32>
    %80 = math.exp %79 : vector<2x128xf32>
    %cst_33 = arith.constant 1.000000e+00 : f32
    %81 = vector.broadcast %cst_33 : f32 to vector<2x128xf32>
    %82 = arith.addf %81, %80 : vector<2x128xf32>
    %83 = arith.divf %81, %82 : vector<2x128xf32>
    %84 = vector.extract_strided_slice %78 {offsets = [0, 64], sizes = [2, 32], strides = [1, 1]} : vector<2x128xf32> to vector<2x32xf32>
    %85 = math.tanh %84 : vector<2x32xf32>
    %86 = vector.extract_strided_slice %83 {offsets = [0, 0], sizes = [2, 32], strides = [1, 1]} : vector<2x128xf32> to vector<2x32xf32>
    %87 = vector.extract_strided_slice %83 {offsets = [0, 32], sizes = [2, 32], strides = [1, 1]} : vector<2x128xf32> to vector<2x32xf32>
    %88 = vector.extract_strided_slice %83 {offsets = [0, 96], sizes = [2, 32], strides = [1, 1]} : vector<2x128xf32> to vector<2x32xf32>
    %89 = arith.mulf %87, %42 : vector<2x32xf32>
    %90 = arith.mulf %86, %85 : vector<2x32xf32>
    %91 = arith.addf %89, %90 : vector<2x32xf32>
    %92 = math.tanh %91 : vector<2x32xf32>
    %93 = arith.mulf %88, %92 : vector<2x32xf32>
    %94 = arith.truncf %93 : vector<2x32xf32> to vector<2x32xbf16>
    %cst_34 = arith.constant dense<0.000000e+00> : vector<2x128xf32>
    %95 = tpu.matmul %94, %1, %cst_34 {dimension_numbers = #tpu.dot_dimension_numbers<[1], [0], [0], [1], [0, 0, 1, 1], [], []>} : vector<2x32xbf16>, vector<32x128xbf16>, vector<2x128xf32> -> vector<2x128xf32>
    %96 = arith.truncf %65 : vector<2x32xf32> to vector<2x32xbf16>
    %cst_35 = arith.constant dense<0.000000e+00> : vector<2x128xf32>
    %97 = tpu.matmul %96, %2, %cst_35 {dimension_numbers = #tpu.dot_dimension_numbers<[1], [0], [0], [1], [0, 0, 1, 1], [], []>} : vector<2x32xbf16>, vector<32x128xbf16>, vector<2x128xf32> -> vector<2x128xf32>
    %98 = arith.addf %95, %97 : vector<2x128xf32>
    %99 = arith.addf %98, %8 : vector<2x128xf32>
    %100 = arith.negf %99 : vector<2x128xf32>
    %101 = math.exp %100 : vector<2x128xf32>
    %cst_36 = arith.constant 1.000000e+00 : f32
    %102 = vector.broadcast %cst_36 : f32 to vector<2x128xf32>
    %103 = arith.addf %102, %101 : vector<2x128xf32>
    %104 = arith.divf %102, %103 : vector<2x128xf32>
    %105 = vector.extract_strided_slice %99 {offsets = [0, 64], sizes = [2, 32], strides = [1, 1]} : vector<2x128xf32> to vector<2x32xf32>
    %106 = math.tanh %105 : vector<2x32xf32>
    %107 = vector.extract_strided_slice %104 {offsets = [0, 0], sizes = [2, 32], strides = [1, 1]} : vector<2x128xf32> to vector<2x32xf32>
    %108 = vector.extract_strided_slice %104 {offsets = [0, 32], sizes = [2, 32], strides = [1, 1]} : vector<2x128xf32> to vector<2x32xf32>
    %109 = vector.extract_strided_slice %104 {offsets = [0, 96], sizes = [2, 32], strides = [1, 1]} : vector<2x128xf32> to vector<2x32xf32>
    %110 = arith.mulf %108, %63 : vector<2x32xf32>
    %111 = arith.mulf %107, %106 : vector<2x32xf32>
    %112 = arith.addf %110, %111 : vector<2x32xf32>
    %113 = math.tanh %112 : vector<2x32xf32>
    %114 = arith.mulf %109, %113 : vector<2x32xf32>
    %c2_i32 = arith.constant 2 : i32
    %c0_37 = arith.constant 0 : index
    %115 = arith.index_cast %c2_i32 : i32 to index
    %116 = memref.load %arg0[%c0_37, %115] : memref<2x8xi32, #tpu.memory_space<smem>>
    %117 = arith.index_cast %116 : i32 to index
    %c0_38 = arith.constant 0 : index
    %118 = vector.load %arg1[%117, %c0_38] : memref<104x128xf32, #tpu.memory_space<vmem>>, vector<1x128xf32>
    %c1_39 = arith.constant 1 : index
    %119 = arith.index_cast %c2_i32 : i32 to index
    %120 = memref.load %arg0[%c1_39, %119] : memref<2x8xi32, #tpu.memory_space<smem>>
    %121 = arith.index_cast %120 : i32 to index
    %c0_40 = arith.constant 0 : index
    %122 = vector.load %arg1[%121, %c0_40] : memref<104x128xf32, #tpu.memory_space<vmem>>, vector<1x128xf32>
    %123 = tpu.concatenate %118, %122 in 0 : vector<1x128xf32>, vector<1x128xf32> -> vector<2x128xf32>
    %124 = arith.truncf %93 : vector<2x32xf32> to vector<2x32xbf16>
    %cst_41 = arith.constant dense<0.000000e+00> : vector<2x128xf32>
    %125 = tpu.matmul %124, %0, %cst_41 {dimension_numbers = #tpu.dot_dimension_numbers<[1], [0], [0], [1], [0, 0, 1, 1], [], []>} : vector<2x32xbf16>, vector<32x128xbf16>, vector<2x128xf32> -> vector<2x128xf32>
    %126 = arith.addf %123, %125 : vector<2x128xf32>
    %127 = arith.addf %126, %5 : vector<2x128xf32>
    %128 = arith.negf %127 : vector<2x128xf32>
    %129 = math.exp %128 : vector<2x128xf32>
    %cst_42 = arith.constant 1.000000e+00 : f32
    %130 = vector.broadcast %cst_42 : f32 to vector<2x128xf32>
    %131 = arith.addf %130, %129 : vector<2x128xf32>
    %132 = arith.divf %130, %131 : vector<2x128xf32>
    %133 = vector.extract_strided_slice %127 {offsets = [0, 64], sizes = [2, 32], strides = [1, 1]} : vector<2x128xf32> to vector<2x32xf32>
    %134 = math.tanh %133 : vector<2x32xf32>
    %135 = vector.extract_strided_slice %132 {offsets = [0, 0], sizes = [2, 32], strides = [1, 1]} : vector<2x128xf32> to vector<2x32xf32>
    %136 = vector.extract_strided_slice %132 {offsets = [0, 32], sizes = [2, 32], strides = [1, 1]} : vector<2x128xf32> to vector<2x32xf32>
    %137 = vector.extract_strided_slice %132 {offsets = [0, 96], sizes = [2, 32], strides = [1, 1]} : vector<2x128xf32> to vector<2x32xf32>
    %138 = arith.mulf %136, %91 : vector<2x32xf32>
    %139 = arith.mulf %135, %134 : vector<2x32xf32>
    %140 = arith.addf %138, %139 : vector<2x32xf32>
    %141 = math.tanh %140 : vector<2x32xf32>
    %142 = arith.mulf %137, %141 : vector<2x32xf32>
    %143 = arith.truncf %142 : vector<2x32xf32> to vector<2x32xbf16>
    %cst_43 = arith.constant dense<0.000000e+00> : vector<2x128xf32>
    %144 = tpu.matmul %143, %1, %cst_43 {dimension_numbers = #tpu.dot_dimension_numbers<[1], [0], [0], [1], [0, 0, 1, 1], [], []>} : vector<2x32xbf16>, vector<32x128xbf16>, vector<2x128xf32> -> vector<2x128xf32>
    %145 = arith.truncf %114 : vector<2x32xf32> to vector<2x32xbf16>
    %cst_44 = arith.constant dense<0.000000e+00> : vector<2x128xf32>
    %146 = tpu.matmul %145, %2, %cst_44 {dimension_numbers = #tpu.dot_dimension_numbers<[1], [0], [0], [1], [0, 0, 1, 1], [], []>} : vector<2x32xbf16>, vector<32x128xbf16>, vector<2x128xf32> -> vector<2x128xf32>
    %147 = arith.addf %144, %146 : vector<2x128xf32>
    %148 = arith.addf %147, %8 : vector<2x128xf32>
    %149 = arith.negf %148 : vector<2x128xf32>
    %150 = math.exp %149 : vector<2x128xf32>
    %cst_45 = arith.constant 1.000000e+00 : f32
    %151 = vector.broadcast %cst_45 : f32 to vector<2x128xf32>
    %152 = arith.addf %151, %150 : vector<2x128xf32>
    %153 = arith.divf %151, %152 : vector<2x128xf32>
    %154 = vector.extract_strided_slice %148 {offsets = [0, 64], sizes = [2, 32], strides = [1, 1]} : vector<2x128xf32> to vector<2x32xf32>
    %155 = math.tanh %154 : vector<2x32xf32>
    %156 = vector.extract_strided_slice %153 {offsets = [0, 0], sizes = [2, 32], strides = [1, 1]} : vector<2x128xf32> to vector<2x32xf32>
    %157 = vector.extract_strided_slice %153 {offsets = [0, 32], sizes = [2, 32], strides = [1, 1]} : vector<2x128xf32> to vector<2x32xf32>
    %158 = vector.extract_strided_slice %153 {offsets = [0, 96], sizes = [2, 32], strides = [1, 1]} : vector<2x128xf32> to vector<2x32xf32>
    %159 = arith.mulf %157, %112 : vector<2x32xf32>
    %160 = arith.mulf %156, %155 : vector<2x32xf32>
    %161 = arith.addf %159, %160 : vector<2x32xf32>
    %162 = math.tanh %161 : vector<2x32xf32>
    %163 = arith.mulf %158, %162 : vector<2x32xf32>
    %c3_i32 = arith.constant 3 : i32
    %c0_46 = arith.constant 0 : index
    %164 = arith.index_cast %c3_i32 : i32 to index
    %165 = memref.load %arg0[%c0_46, %164] : memref<2x8xi32, #tpu.memory_space<smem>>
    %166 = arith.index_cast %165 : i32 to index
    %c0_47 = arith.constant 0 : index
    %167 = vector.load %arg1[%166, %c0_47] : memref<104x128xf32, #tpu.memory_space<vmem>>, vector<1x128xf32>
    %c1_48 = arith.constant 1 : index
    %168 = arith.index_cast %c3_i32 : i32 to index
    %169 = memref.load %arg0[%c1_48, %168] : memref<2x8xi32, #tpu.memory_space<smem>>
    %170 = arith.index_cast %169 : i32 to index
    %c0_49 = arith.constant 0 : index
    %171 = vector.load %arg1[%170, %c0_49] : memref<104x128xf32, #tpu.memory_space<vmem>>, vector<1x128xf32>
    %172 = tpu.concatenate %167, %171 in 0 : vector<1x128xf32>, vector<1x128xf32> -> vector<2x128xf32>
    %173 = arith.truncf %142 : vector<2x32xf32> to vector<2x32xbf16>
    %cst_50 = arith.constant dense<0.000000e+00> : vector<2x128xf32>
    %174 = tpu.matmul %173, %0, %cst_50 {dimension_numbers = #tpu.dot_dimension_numbers<[1], [0], [0], [1], [0, 0, 1, 1], [], []>} : vector<2x32xbf16>, vector<32x128xbf16>, vector<2x128xf32> -> vector<2x128xf32>
    %175 = arith.addf %172, %174 : vector<2x128xf32>
    %176 = arith.addf %175, %5 : vector<2x128xf32>
    %177 = arith.negf %176 : vector<2x128xf32>
    %178 = math.exp %177 : vector<2x128xf32>
    %cst_51 = arith.constant 1.000000e+00 : f32
    %179 = vector.broadcast %cst_51 : f32 to vector<2x128xf32>
    %180 = arith.addf %179, %178 : vector<2x128xf32>
    %181 = arith.divf %179, %180 : vector<2x128xf32>
    %182 = vector.extract_strided_slice %176 {offsets = [0, 64], sizes = [2, 32], strides = [1, 1]} : vector<2x128xf32> to vector<2x32xf32>
    %183 = math.tanh %182 : vector<2x32xf32>
    %184 = vector.extract_strided_slice %181 {offsets = [0, 0], sizes = [2, 32], strides = [1, 1]} : vector<2x128xf32> to vector<2x32xf32>
    %185 = vector.extract_strided_slice %181 {offsets = [0, 32], sizes = [2, 32], strides = [1, 1]} : vector<2x128xf32> to vector<2x32xf32>
    %186 = vector.extract_strided_slice %181 {offsets = [0, 96], sizes = [2, 32], strides = [1, 1]} : vector<2x128xf32> to vector<2x32xf32>
    %187 = arith.mulf %185, %140 : vector<2x32xf32>
    %188 = arith.mulf %184, %183 : vector<2x32xf32>
    %189 = arith.addf %187, %188 : vector<2x32xf32>
    %190 = math.tanh %189 : vector<2x32xf32>
    %191 = arith.mulf %186, %190 : vector<2x32xf32>
    %192 = arith.truncf %191 : vector<2x32xf32> to vector<2x32xbf16>
    %cst_52 = arith.constant dense<0.000000e+00> : vector<2x128xf32>
    %193 = tpu.matmul %192, %1, %cst_52 {dimension_numbers = #tpu.dot_dimension_numbers<[1], [0], [0], [1], [0, 0, 1, 1], [], []>} : vector<2x32xbf16>, vector<32x128xbf16>, vector<2x128xf32> -> vector<2x128xf32>
    %194 = arith.truncf %163 : vector<2x32xf32> to vector<2x32xbf16>
    %cst_53 = arith.constant dense<0.000000e+00> : vector<2x128xf32>
    %195 = tpu.matmul %194, %2, %cst_53 {dimension_numbers = #tpu.dot_dimension_numbers<[1], [0], [0], [1], [0, 0, 1, 1], [], []>} : vector<2x32xbf16>, vector<32x128xbf16>, vector<2x128xf32> -> vector<2x128xf32>
    %196 = arith.addf %193, %195 : vector<2x128xf32>
    %197 = arith.addf %196, %8 : vector<2x128xf32>
    %198 = arith.negf %197 : vector<2x128xf32>
    %199 = math.exp %198 : vector<2x128xf32>
    %cst_54 = arith.constant 1.000000e+00 : f32
    %200 = vector.broadcast %cst_54 : f32 to vector<2x128xf32>
    %201 = arith.addf %200, %199 : vector<2x128xf32>
    %202 = arith.divf %200, %201 : vector<2x128xf32>
    %203 = vector.extract_strided_slice %197 {offsets = [0, 64], sizes = [2, 32], strides = [1, 1]} : vector<2x128xf32> to vector<2x32xf32>
    %204 = math.tanh %203 : vector<2x32xf32>
    %205 = vector.extract_strided_slice %202 {offsets = [0, 0], sizes = [2, 32], strides = [1, 1]} : vector<2x128xf32> to vector<2x32xf32>
    %206 = vector.extract_strided_slice %202 {offsets = [0, 32], sizes = [2, 32], strides = [1, 1]} : vector<2x128xf32> to vector<2x32xf32>
    %207 = vector.extract_strided_slice %202 {offsets = [0, 96], sizes = [2, 32], strides = [1, 1]} : vector<2x128xf32> to vector<2x32xf32>
    %208 = arith.mulf %206, %161 : vector<2x32xf32>
    %209 = arith.mulf %205, %204 : vector<2x32xf32>
    %210 = arith.addf %208, %209 : vector<2x32xf32>
    %211 = math.tanh %210 : vector<2x32xf32>
    %212 = arith.mulf %207, %211 : vector<2x32xf32>
    %c4_i32 = arith.constant 4 : i32
    %c0_55 = arith.constant 0 : index
    %213 = arith.index_cast %c4_i32 : i32 to index
    %214 = memref.load %arg0[%c0_55, %213] : memref<2x8xi32, #tpu.memory_space<smem>>
    %215 = arith.index_cast %214 : i32 to index
    %c0_56 = arith.constant 0 : index
    %216 = vector.load %arg1[%215, %c0_56] : memref<104x128xf32, #tpu.memory_space<vmem>>, vector<1x128xf32>
    %c1_57 = arith.constant 1 : index
    %217 = arith.index_cast %c4_i32 : i32 to index
    %218 = memref.load %arg0[%c1_57, %217] : memref<2x8xi32, #tpu.memory_space<smem>>
    %219 = arith.index_cast %218 : i32 to index
    %c0_58 = arith.constant 0 : index
    %220 = vector.load %arg1[%219, %c0_58] : memref<104x128xf32, #tpu.memory_space<vmem>>, vector<1x128xf32>
    %221 = tpu.concatenate %216, %220 in 0 : vector<1x128xf32>, vector<1x128xf32> -> vector<2x128xf32>
    %222 = arith.truncf %191 : vector<2x32xf32> to vector<2x32xbf16>
    %cst_59 = arith.constant dense<0.000000e+00> : vector<2x128xf32>
    %223 = tpu.matmul %222, %0, %cst_59 {dimension_numbers = #tpu.dot_dimension_numbers<[1], [0], [0], [1], [0, 0, 1, 1], [], []>} : vector<2x32xbf16>, vector<32x128xbf16>, vector<2x128xf32> -> vector<2x128xf32>
    %224 = arith.addf %221, %223 : vector<2x128xf32>
    %225 = arith.addf %224, %5 : vector<2x128xf32>
    %226 = arith.negf %225 : vector<2x128xf32>
    %227 = math.exp %226 : vector<2x128xf32>
    %cst_60 = arith.constant 1.000000e+00 : f32
    %228 = vector.broadcast %cst_60 : f32 to vector<2x128xf32>
    %229 = arith.addf %228, %227 : vector<2x128xf32>
    %230 = arith.divf %228, %229 : vector<2x128xf32>
    %231 = vector.extract_strided_slice %225 {offsets = [0, 64], sizes = [2, 32], strides = [1, 1]} : vector<2x128xf32> to vector<2x32xf32>
    %232 = math.tanh %231 : vector<2x32xf32>
    %233 = vector.extract_strided_slice %230 {offsets = [0, 0], sizes = [2, 32], strides = [1, 1]} : vector<2x128xf32> to vector<2x32xf32>
    %234 = vector.extract_strided_slice %230 {offsets = [0, 32], sizes = [2, 32], strides = [1, 1]} : vector<2x128xf32> to vector<2x32xf32>
    %235 = vector.extract_strided_slice %230 {offsets = [0, 96], sizes = [2, 32], strides = [1, 1]} : vector<2x128xf32> to vector<2x32xf32>
    %236 = arith.mulf %234, %189 : vector<2x32xf32>
    %237 = arith.mulf %233, %232 : vector<2x32xf32>
    %238 = arith.addf %236, %237 : vector<2x32xf32>
    %239 = math.tanh %238 : vector<2x32xf32>
    %240 = arith.mulf %235, %239 : vector<2x32xf32>
    %241 = arith.truncf %240 : vector<2x32xf32> to vector<2x32xbf16>
    %cst_61 = arith.constant dense<0.000000e+00> : vector<2x128xf32>
    %242 = tpu.matmul %241, %1, %cst_61 {dimension_numbers = #tpu.dot_dimension_numbers<[1], [0], [0], [1], [0, 0, 1, 1], [], []>} : vector<2x32xbf16>, vector<32x128xbf16>, vector<2x128xf32> -> vector<2x128xf32>
    %243 = arith.truncf %212 : vector<2x32xf32> to vector<2x32xbf16>
    %cst_62 = arith.constant dense<0.000000e+00> : vector<2x128xf32>
    %244 = tpu.matmul %243, %2, %cst_62 {dimension_numbers = #tpu.dot_dimension_numbers<[1], [0], [0], [1], [0, 0, 1, 1], [], []>} : vector<2x32xbf16>, vector<32x128xbf16>, vector<2x128xf32> -> vector<2x128xf32>
    %245 = arith.addf %242, %244 : vector<2x128xf32>
    %246 = arith.addf %245, %8 : vector<2x128xf32>
    %247 = arith.negf %246 : vector<2x128xf32>
    %248 = math.exp %247 : vector<2x128xf32>
    %cst_63 = arith.constant 1.000000e+00 : f32
    %249 = vector.broadcast %cst_63 : f32 to vector<2x128xf32>
    %250 = arith.addf %249, %248 : vector<2x128xf32>
    %251 = arith.divf %249, %250 : vector<2x128xf32>
    %252 = vector.extract_strided_slice %246 {offsets = [0, 64], sizes = [2, 32], strides = [1, 1]} : vector<2x128xf32> to vector<2x32xf32>
    %253 = math.tanh %252 : vector<2x32xf32>
    %254 = vector.extract_strided_slice %251 {offsets = [0, 0], sizes = [2, 32], strides = [1, 1]} : vector<2x128xf32> to vector<2x32xf32>
    %255 = vector.extract_strided_slice %251 {offsets = [0, 32], sizes = [2, 32], strides = [1, 1]} : vector<2x128xf32> to vector<2x32xf32>
    %256 = vector.extract_strided_slice %251 {offsets = [0, 96], sizes = [2, 32], strides = [1, 1]} : vector<2x128xf32> to vector<2x32xf32>
    %257 = arith.mulf %255, %210 : vector<2x32xf32>
    %258 = arith.mulf %254, %253 : vector<2x32xf32>
    %259 = arith.addf %257, %258 : vector<2x32xf32>
    %260 = math.tanh %259 : vector<2x32xf32>
    %261 = arith.mulf %256, %260 : vector<2x32xf32>
    %c5_i32 = arith.constant 5 : i32
    %c0_64 = arith.constant 0 : index
    %262 = arith.index_cast %c5_i32 : i32 to index
    %263 = memref.load %arg0[%c0_64, %262] : memref<2x8xi32, #tpu.memory_space<smem>>
    %264 = arith.index_cast %263 : i32 to index
    %c0_65 = arith.constant 0 : index
    %265 = vector.load %arg1[%264, %c0_65] : memref<104x128xf32, #tpu.memory_space<vmem>>, vector<1x128xf32>
    %c1_66 = arith.constant 1 : index
    %266 = arith.index_cast %c5_i32 : i32 to index
    %267 = memref.load %arg0[%c1_66, %266] : memref<2x8xi32, #tpu.memory_space<smem>>
    %268 = arith.index_cast %267 : i32 to index
    %c0_67 = arith.constant 0 : index
    %269 = vector.load %arg1[%268, %c0_67] : memref<104x128xf32, #tpu.memory_space<vmem>>, vector<1x128xf32>
    %270 = tpu.concatenate %265, %269 in 0 : vector<1x128xf32>, vector<1x128xf32> -> vector<2x128xf32>
    %271 = arith.truncf %240 : vector<2x32xf32> to vector<2x32xbf16>
    %cst_68 = arith.constant dense<0.000000e+00> : vector<2x128xf32>
    %272 = tpu.matmul %271, %0, %cst_68 {dimension_numbers = #tpu.dot_dimension_numbers<[1], [0], [0], [1], [0, 0, 1, 1], [], []>} : vector<2x32xbf16>, vector<32x128xbf16>, vector<2x128xf32> -> vector<2x128xf32>
    %273 = arith.addf %270, %272 : vector<2x128xf32>
    %274 = arith.addf %273, %5 : vector<2x128xf32>
    %275 = arith.negf %274 : vector<2x128xf32>
    %276 = math.exp %275 : vector<2x128xf32>
    %cst_69 = arith.constant 1.000000e+00 : f32
    %277 = vector.broadcast %cst_69 : f32 to vector<2x128xf32>
    %278 = arith.addf %277, %276 : vector<2x128xf32>
    %279 = arith.divf %277, %278 : vector<2x128xf32>
    %280 = vector.extract_strided_slice %274 {offsets = [0, 64], sizes = [2, 32], strides = [1, 1]} : vector<2x128xf32> to vector<2x32xf32>
    %281 = math.tanh %280 : vector<2x32xf32>
    %282 = vector.extract_strided_slice %279 {offsets = [0, 0], sizes = [2, 32], strides = [1, 1]} : vector<2x128xf32> to vector<2x32xf32>
    %283 = vector.extract_strided_slice %279 {offsets = [0, 32], sizes = [2, 32], strides = [1, 1]} : vector<2x128xf32> to vector<2x32xf32>
    %284 = vector.extract_strided_slice %279 {offsets = [0, 96], sizes = [2, 32], strides = [1, 1]} : vector<2x128xf32> to vector<2x32xf32>
    %285 = arith.mulf %283, %238 : vector<2x32xf32>
    %286 = arith.mulf %282, %281 : vector<2x32xf32>
    %287 = arith.addf %285, %286 : vector<2x32xf32>
    %288 = math.tanh %287 : vector<2x32xf32>
    %289 = arith.mulf %284, %288 : vector<2x32xf32>
    %290 = arith.truncf %289 : vector<2x32xf32> to vector<2x32xbf16>
    %cst_70 = arith.constant dense<0.000000e+00> : vector<2x128xf32>
    %291 = tpu.matmul %290, %1, %cst_70 {dimension_numbers = #tpu.dot_dimension_numbers<[1], [0], [0], [1], [0, 0, 1, 1], [], []>} : vector<2x32xbf16>, vector<32x128xbf16>, vector<2x128xf32> -> vector<2x128xf32>
    %292 = arith.truncf %261 : vector<2x32xf32> to vector<2x32xbf16>
    %cst_71 = arith.constant dense<0.000000e+00> : vector<2x128xf32>
    %293 = tpu.matmul %292, %2, %cst_71 {dimension_numbers = #tpu.dot_dimension_numbers<[1], [0], [0], [1], [0, 0, 1, 1], [], []>} : vector<2x32xbf16>, vector<32x128xbf16>, vector<2x128xf32> -> vector<2x128xf32>
    %294 = arith.addf %291, %293 : vector<2x128xf32>
    %295 = arith.addf %294, %8 : vector<2x128xf32>
    %296 = arith.negf %295 : vector<2x128xf32>
    %297 = math.exp %296 : vector<2x128xf32>
    %cst_72 = arith.constant 1.000000e+00 : f32
    %298 = vector.broadcast %cst_72 : f32 to vector<2x128xf32>
    %299 = arith.addf %298, %297 : vector<2x128xf32>
    %300 = arith.divf %298, %299 : vector<2x128xf32>
    %301 = vector.extract_strided_slice %295 {offsets = [0, 64], sizes = [2, 32], strides = [1, 1]} : vector<2x128xf32> to vector<2x32xf32>
    %302 = math.tanh %301 : vector<2x32xf32>
    %303 = vector.extract_strided_slice %300 {offsets = [0, 0], sizes = [2, 32], strides = [1, 1]} : vector<2x128xf32> to vector<2x32xf32>
    %304 = vector.extract_strided_slice %300 {offsets = [0, 32], sizes = [2, 32], strides = [1, 1]} : vector<2x128xf32> to vector<2x32xf32>
    %305 = vector.extract_strided_slice %300 {offsets = [0, 96], sizes = [2, 32], strides = [1, 1]} : vector<2x128xf32> to vector<2x32xf32>
    %306 = arith.mulf %304, %259 : vector<2x32xf32>
    %307 = arith.mulf %303, %302 : vector<2x32xf32>
    %308 = arith.addf %306, %307 : vector<2x32xf32>
    %309 = math.tanh %308 : vector<2x32xf32>
    %310 = arith.mulf %305, %309 : vector<2x32xf32>
    %c6_i32 = arith.constant 6 : i32
    %c0_73 = arith.constant 0 : index
    %311 = arith.index_cast %c6_i32 : i32 to index
    %312 = memref.load %arg0[%c0_73, %311] : memref<2x8xi32, #tpu.memory_space<smem>>
    %313 = arith.index_cast %312 : i32 to index
    %c0_74 = arith.constant 0 : index
    %314 = vector.load %arg1[%313, %c0_74] : memref<104x128xf32, #tpu.memory_space<vmem>>, vector<1x128xf32>
    %c1_75 = arith.constant 1 : index
    %315 = arith.index_cast %c6_i32 : i32 to index
    %316 = memref.load %arg0[%c1_75, %315] : memref<2x8xi32, #tpu.memory_space<smem>>
    %317 = arith.index_cast %316 : i32 to index
    %c0_76 = arith.constant 0 : index
    %318 = vector.load %arg1[%317, %c0_76] : memref<104x128xf32, #tpu.memory_space<vmem>>, vector<1x128xf32>
    %319 = tpu.concatenate %314, %318 in 0 : vector<1x128xf32>, vector<1x128xf32> -> vector<2x128xf32>
    %320 = arith.truncf %289 : vector<2x32xf32> to vector<2x32xbf16>
    %cst_77 = arith.constant dense<0.000000e+00> : vector<2x128xf32>
    %321 = tpu.matmul %320, %0, %cst_77 {dimension_numbers = #tpu.dot_dimension_numbers<[1], [0], [0], [1], [0, 0, 1, 1], [], []>} : vector<2x32xbf16>, vector<32x128xbf16>, vector<2x128xf32> -> vector<2x128xf32>
    %322 = arith.addf %319, %321 : vector<2x128xf32>
    %323 = arith.addf %322, %5 : vector<2x128xf32>
    %324 = arith.negf %323 : vector<2x128xf32>
    %325 = math.exp %324 : vector<2x128xf32>
    %cst_78 = arith.constant 1.000000e+00 : f32
    %326 = vector.broadcast %cst_78 : f32 to vector<2x128xf32>
    %327 = arith.addf %326, %325 : vector<2x128xf32>
    %328 = arith.divf %326, %327 : vector<2x128xf32>
    %329 = vector.extract_strided_slice %323 {offsets = [0, 64], sizes = [2, 32], strides = [1, 1]} : vector<2x128xf32> to vector<2x32xf32>
    %330 = math.tanh %329 : vector<2x32xf32>
    %331 = vector.extract_strided_slice %328 {offsets = [0, 0], sizes = [2, 32], strides = [1, 1]} : vector<2x128xf32> to vector<2x32xf32>
    %332 = vector.extract_strided_slice %328 {offsets = [0, 32], sizes = [2, 32], strides = [1, 1]} : vector<2x128xf32> to vector<2x32xf32>
    %333 = vector.extract_strided_slice %328 {offsets = [0, 96], sizes = [2, 32], strides = [1, 1]} : vector<2x128xf32> to vector<2x32xf32>
    %334 = arith.mulf %332, %287 : vector<2x32xf32>
    %335 = arith.mulf %331, %330 : vector<2x32xf32>
    %336 = arith.addf %334, %335 : vector<2x32xf32>
    %337 = math.tanh %336 : vector<2x32xf32>
    %338 = arith.mulf %333, %337 : vector<2x32xf32>
    %339 = arith.truncf %338 : vector<2x32xf32> to vector<2x32xbf16>
    %cst_79 = arith.constant dense<0.000000e+00> : vector<2x128xf32>
    %340 = tpu.matmul %339, %1, %cst_79 {dimension_numbers = #tpu.dot_dimension_numbers<[1], [0], [0], [1], [0, 0, 1, 1], [], []>} : vector<2x32xbf16>, vector<32x128xbf16>, vector<2x128xf32> -> vector<2x128xf32>
    %341 = arith.truncf %310 : vector<2x32xf32> to vector<2x32xbf16>
    %cst_80 = arith.constant dense<0.000000e+00> : vector<2x128xf32>
    %342 = tpu.matmul %341, %2, %cst_80 {dimension_numbers = #tpu.dot_dimension_numbers<[1], [0], [0], [1], [0, 0, 1, 1], [], []>} : vector<2x32xbf16>, vector<32x128xbf16>, vector<2x128xf32> -> vector<2x128xf32>
    %343 = arith.addf %340, %342 : vector<2x128xf32>
    %344 = arith.addf %343, %8 : vector<2x128xf32>
    %345 = arith.negf %344 : vector<2x128xf32>
    %346 = math.exp %345 : vector<2x128xf32>
    %cst_81 = arith.constant 1.000000e+00 : f32
    %347 = vector.broadcast %cst_81 : f32 to vector<2x128xf32>
    %348 = arith.addf %347, %346 : vector<2x128xf32>
    %349 = arith.divf %347, %348 : vector<2x128xf32>
    %350 = vector.extract_strided_slice %344 {offsets = [0, 64], sizes = [2, 32], strides = [1, 1]} : vector<2x128xf32> to vector<2x32xf32>
    %351 = math.tanh %350 : vector<2x32xf32>
    %352 = vector.extract_strided_slice %349 {offsets = [0, 0], sizes = [2, 32], strides = [1, 1]} : vector<2x128xf32> to vector<2x32xf32>
    %353 = vector.extract_strided_slice %349 {offsets = [0, 32], sizes = [2, 32], strides = [1, 1]} : vector<2x128xf32> to vector<2x32xf32>
    %354 = vector.extract_strided_slice %349 {offsets = [0, 96], sizes = [2, 32], strides = [1, 1]} : vector<2x128xf32> to vector<2x32xf32>
    %355 = arith.mulf %353, %308 : vector<2x32xf32>
    %356 = arith.mulf %352, %351 : vector<2x32xf32>
    %357 = arith.addf %355, %356 : vector<2x32xf32>
    %358 = math.tanh %357 : vector<2x32xf32>
    %359 = arith.mulf %354, %358 : vector<2x32xf32>
    %c7_i32 = arith.constant 7 : i32
    %c0_82 = arith.constant 0 : index
    %360 = arith.index_cast %c7_i32 : i32 to index
    %361 = memref.load %arg0[%c0_82, %360] : memref<2x8xi32, #tpu.memory_space<smem>>
    %362 = arith.index_cast %361 : i32 to index
    %c0_83 = arith.constant 0 : index
    %363 = vector.load %arg1[%362, %c0_83] : memref<104x128xf32, #tpu.memory_space<vmem>>, vector<1x128xf32>
    %c1_84 = arith.constant 1 : index
    %364 = arith.index_cast %c7_i32 : i32 to index
    %365 = memref.load %arg0[%c1_84, %364] : memref<2x8xi32, #tpu.memory_space<smem>>
    %366 = arith.index_cast %365 : i32 to index
    %c0_85 = arith.constant 0 : index
    %367 = vector.load %arg1[%366, %c0_85] : memref<104x128xf32, #tpu.memory_space<vmem>>, vector<1x128xf32>
    %368 = tpu.concatenate %363, %367 in 0 : vector<1x128xf32>, vector<1x128xf32> -> vector<2x128xf32>
    %369 = arith.truncf %338 : vector<2x32xf32> to vector<2x32xbf16>
    %cst_86 = arith.constant dense<0.000000e+00> : vector<2x128xf32>
    %370 = tpu.matmul %369, %0, %cst_86 {dimension_numbers = #tpu.dot_dimension_numbers<[1], [0], [0], [1], [0, 0, 1, 1], [], []>} : vector<2x32xbf16>, vector<32x128xbf16>, vector<2x128xf32> -> vector<2x128xf32>
    %371 = arith.addf %368, %370 : vector<2x128xf32>
    %372 = arith.addf %371, %5 : vector<2x128xf32>
    %373 = arith.negf %372 : vector<2x128xf32>
    %374 = math.exp %373 : vector<2x128xf32>
    %cst_87 = arith.constant 1.000000e+00 : f32
    %375 = vector.broadcast %cst_87 : f32 to vector<2x128xf32>
    %376 = arith.addf %375, %374 : vector<2x128xf32>
    %377 = arith.divf %375, %376 : vector<2x128xf32>
    %378 = vector.extract_strided_slice %372 {offsets = [0, 64], sizes = [2, 32], strides = [1, 1]} : vector<2x128xf32> to vector<2x32xf32>
    %379 = math.tanh %378 : vector<2x32xf32>
    %380 = vector.extract_strided_slice %377 {offsets = [0, 0], sizes = [2, 32], strides = [1, 1]} : vector<2x128xf32> to vector<2x32xf32>
    %381 = vector.extract_strided_slice %377 {offsets = [0, 32], sizes = [2, 32], strides = [1, 1]} : vector<2x128xf32> to vector<2x32xf32>
    %382 = vector.extract_strided_slice %377 {offsets = [0, 96], sizes = [2, 32], strides = [1, 1]} : vector<2x128xf32> to vector<2x32xf32>
    %383 = arith.mulf %381, %336 : vector<2x32xf32>
    %384 = arith.mulf %380, %379 : vector<2x32xf32>
    %385 = arith.addf %383, %384 : vector<2x32xf32>
    %386 = math.tanh %385 : vector<2x32xf32>
    %387 = arith.mulf %382, %386 : vector<2x32xf32>
    %388 = arith.truncf %387 : vector<2x32xf32> to vector<2x32xbf16>
    %cst_88 = arith.constant dense<0.000000e+00> : vector<2x128xf32>
    %389 = tpu.matmul %388, %1, %cst_88 {dimension_numbers = #tpu.dot_dimension_numbers<[1], [0], [0], [1], [0, 0, 1, 1], [], []>} : vector<2x32xbf16>, vector<32x128xbf16>, vector<2x128xf32> -> vector<2x128xf32>
    %390 = arith.truncf %359 : vector<2x32xf32> to vector<2x32xbf16>
    %cst_89 = arith.constant dense<0.000000e+00> : vector<2x128xf32>
    %391 = tpu.matmul %390, %2, %cst_89 {dimension_numbers = #tpu.dot_dimension_numbers<[1], [0], [0], [1], [0, 0, 1, 1], [], []>} : vector<2x32xbf16>, vector<32x128xbf16>, vector<2x128xf32> -> vector<2x128xf32>
    %392 = arith.addf %389, %391 : vector<2x128xf32>
    %393 = arith.addf %392, %8 : vector<2x128xf32>
    %394 = arith.negf %393 : vector<2x128xf32>
    %395 = math.exp %394 : vector<2x128xf32>
    %cst_90 = arith.constant 1.000000e+00 : f32
    %396 = vector.broadcast %cst_90 : f32 to vector<2x128xf32>
    %397 = arith.addf %396, %395 : vector<2x128xf32>
    %398 = arith.divf %396, %397 : vector<2x128xf32>
    %399 = vector.extract_strided_slice %393 {offsets = [0, 64], sizes = [2, 32], strides = [1, 1]} : vector<2x128xf32> to vector<2x32xf32>
    %400 = math.tanh %399 : vector<2x32xf32>
    %401 = vector.extract_strided_slice %398 {offsets = [0, 0], sizes = [2, 32], strides = [1, 1]} : vector<2x128xf32> to vector<2x32xf32>
    %402 = vector.extract_strided_slice %398 {offsets = [0, 32], sizes = [2, 32], strides = [1, 1]} : vector<2x128xf32> to vector<2x32xf32>
    %403 = vector.extract_strided_slice %398 {offsets = [0, 96], sizes = [2, 32], strides = [1, 1]} : vector<2x128xf32> to vector<2x32xf32>
    %404 = arith.mulf %402, %357 : vector<2x32xf32>
    %405 = arith.mulf %401, %400 : vector<2x32xf32>
    %406 = arith.addf %404, %405 : vector<2x32xf32>
    %407 = math.tanh %406 : vector<2x32xf32>
    %408 = arith.mulf %403, %407 : vector<2x32xf32>
    %c8_i32 = arith.constant 8 : i32
    %c0_91 = arith.constant 0 : index
    %c0_92 = arith.constant 0 : index
    %409 = vector.load %arg9[%c0_91, %c0_92] : memref<1x32xf32, #tpu.memory_space<vmem>>, vector<1x32xf32>
    %410 = vector.broadcast %409 : vector<1x32xf32> to vector<2x32xf32>
    %411 = arith.mulf %408, %410 : vector<2x32xf32>
    %cst_93 = arith.constant dense<0.000000e+00> : vector<2xf32>
    %412 = vector.multi_reduction <add>, %411, %cst_93 [1] : vector<2x32xf32> to vector<2xf32>
    %413 = vector.shape_cast %412 : vector<2xf32> to vector<2x1xf32>
    %c0_94 = arith.constant 0 : index
    %c0_95 = arith.constant 0 : index
    %414 = vector.load %arg10[%c0_94, %c0_95] : memref<1x1xf32, #tpu.memory_space<vmem>>, vector<1x1xf32>
    %415 = vector.broadcast %414 : vector<1x1xf32> to vector<2x1xf32>
    %416 = arith.addf %413, %415 : vector<2x1xf32>
    %417 = arith.negf %416 : vector<2x1xf32>
    %418 = math.exp %417 : vector<2x1xf32>
    %cst_96 = arith.constant 1.000000e+00 : f32
    %419 = vector.broadcast %cst_96 : f32 to vector<2x1xf32>
    %420 = arith.addf %419, %418 : vector<2x1xf32>
    %421 = arith.divf %419, %420 : vector<2x1xf32>
    %c0_97 = arith.constant 0 : index
    %c0_98 = arith.constant 0 : index
    %422 = vector.load %arg11[%c0_97, %c0_98] : memref<2x1xf32, #tpu.memory_space<vmem>>, vector<2x1xf32>
    tpu.vector_store %arg11[%c0_97, %c0_98], %421 {strides = array<i32>} : memref<2x1xf32, #tpu.memory_space<vmem>>, vector<2x1xf32>,
    %c0_99 = arith.constant 0 : index
    %c0_100 = arith.constant 0 : index
    %c0_101 = arith.constant 0 : index
    %423 = vector.load %arg12[%c0_99, %c0_100, %c0_101] : memref<2x2x32xf32, #tpu.memory_space<vmem>>, vector<1x2x32xf32>
    %424 = vector.shape_cast %423 : vector<1x2x32xf32> to vector<2x32xf32>
    %425 = vector.shape_cast %387 : vector<2x32xf32> to vector<1x2x32xf32>
    tpu.vector_store %arg12[%c0_99, %c0_100, %c0_101], %425 {strides = array<i32>} : memref<2x2x32xf32, #tpu.memory_space<vmem>>, vector<1x2x32xf32>,
    %c1_102 = arith.constant 1 : index
    %c0_103 = arith.constant 0 : index
    %c0_104 = arith.constant 0 : index
    %426 = vector.load %arg12[%c1_102, %c0_103, %c0_104] : memref<2x2x32xf32, #tpu.memory_space<vmem>>, vector<1x2x32xf32>
    %427 = vector.shape_cast %426 : vector<1x2x32xf32> to vector<2x32xf32>
    %428 = vector.shape_cast %408 : vector<2x32xf32> to vector<1x2x32xf32>
    tpu.vector_store %arg12[%c1_102, %c0_103, %c0_104], %428 {strides = array<i32>} : memref<2x2x32xf32, #tpu.memory_space<vmem>>, vector<1x2x32xf32>,
    %c0_105 = arith.constant 0 : index
    %c0_106 = arith.constant 0 : index
    %c0_107 = arith.constant 0 : index
    %429 = vector.load %arg13[%c0_105, %c0_106, %c0_107] : memref<2x2x32xf32, #tpu.memory_space<vmem>>, vector<1x2x32xf32>
    %430 = vector.shape_cast %429 : vector<1x2x32xf32> to vector<2x32xf32>
    %431 = vector.shape_cast %385 : vector<2x32xf32> to vector<1x2x32xf32>
    tpu.vector_store %arg13[%c0_105, %c0_106, %c0_107], %431 {strides = array<i32>} : memref<2x2x32xf32, #tpu.memory_space<vmem>>, vector<1x2x32xf32>,
    %c1_108 = arith.constant 1 : index
    %c0_109 = arith.constant 0 : index
    %c0_110 = arith.constant 0 : index
    %432 = vector.load %arg13[%c1_108, %c0_109, %c0_110] : memref<2x2x32xf32, #tpu.memory_space<vmem>>, vector<1x2x32xf32>
    %433 = vector.shape_cast %432 : vector<1x2x32xf32> to vector<2x32xf32>
    %434 = vector.shape_cast %406 : vector<2x32xf32> to vector<1x2x32xf32>
    tpu.vector_store %arg13[%c1_108, %c0_109, %c0_110], %434 {strides = array<i32>} : memref<2x2x32xf32, #tpu.memory_space<vmem>>, vector<1x2x32xf32>,
    return
  }
}

</mosaic_0001>

<llo_original>
// kernel: sentiment_lstm_forward.1
$region0: #{sentiment_lstm_forward.1}
  #allocation0 [shape = 'u32[]', space=smem, size = 0x4, offset = 0x4, fixed_abs, tag = 'smem constant byte address 0x4 - core index']
  #allocation1 [shape = 'u32[144,128]{1,0:T(1,128)}', space=vmem, size = 0x12000, scoped, tag = 'internal scratch']
  #allocation2 [shape = 'f32[1,1]{1,0:T(1,128)S(1)}', space=vmem, size = 0x200, scoped, tag = 'scoped memory for sentiment_lstm_forward.1']
  %s0 = inlined_call_operand.vmem [shape: s32[2,8], index: 0, kind: input, shape index: {}]
  %s1 = inlined_call_operand.hbm [shape: f32[104,128], index: 1, kind: input, shape index: {}]
  %s2 = inlined_call_operand.vmem [shape: bf16[32,128], index: 2, kind: input, shape index: {}]
  %s3 = inlined_call_operand.hbm [shape: f32[1,128], index: 3, kind: input, shape index: {}]
  %s4 = inlined_call_operand.vmem [shape: bf16[32,128], index: 4, kind: input, shape index: {}]
  %s5 = inlined_call_operand.hbm [shape: bf16[32,128], index: 5, kind: input, shape index: {}]
  %s6 = inlined_call_operand.hbm [shape: f32[1,128], index: 6, kind: input, shape index: {}]
  %s7 = inlined_call_operand.hbm [shape: f32[2,2,32], index: 7, kind: input, shape index: {}]
  %s8 = inlined_call_operand.hbm [shape: f32[2,2,32], index: 8, kind: input, shape index: {}]
  %s9 = inlined_call_operand.hbm [shape: f32[1,32], index: 9, kind: input, shape index: {}]
  %s10 = inlined_call_operand.<no memory space> [shape: f32[1,1], index: 10, kind: input, shape index: {}]
  %s11 = inlined_call_operand.vmem [shape: f32[2,1], index: 11, kind: output, shape index: {0}]
  %s12 = inlined_call_operand.hbm [shape: f32[2,2,32], index: 12, kind: output, shape index: {1}]
  %s13 = inlined_call_operand.hbm [shape: f32[2,2,32], index: 13, kind: output, shape index: {2}]
  %14 = xla_tuple %s11, %s12, %s13
  %s15 = sld [smem:[#allocation0]]
  $region102: #{sentiment_lstm_forward.1} parent=0
    _
  %s17 = ssub.s32 1, %s15
  %s18 = scalar_select 0, %s17, %s15
  %v19 = vstv %s10
  %20 = vst [vmem:[#allocation2] sm:$0x1] %v19
  $region1: #{sentiment_lstm_forward.1} parent=0
    #allocation3 [shape = 'u8[1024]{0}', space=smem, size = 0x400, scoped, tag = 'input window, operand 0, single buffered']
    #allocation4 [shape = 's32[1]{0}', space=sflag, size = 0x4, scoped, tag = 'scoped memory for sentiment_lstm_forward.1']
    #allocation5 [shape = 's32[1]{0}', space=sflag, size = 0x4, scoped, tag = 'scoped memory for sentiment_lstm_forward.1']
    #allocation6 [shape = 's32[1]{0}', space=sflag, size = 0x4, scoped, tag = 'scoped memory for sentiment_lstm_forward.1']
    #allocation7 [shape = 'u8[53248]{0}', space=vmem, size = 0xd000, scoped, tag = 'input window, operand 1, single buffered']
    #allocation8 [shape = 'u8[512]{0}', space=vmem, size = 0x400, scoped, tag = 'input window, operand 3, single buffered']
    #allocation9 [shape = 's32[1]{0}', space=sflag, size = 0x4, scoped, tag = 'scoped memory for sentiment_lstm_forward.1']
    #allocation10 [shape = 'u8[8192]{0}', space=vmem, size = 0x2000, scoped, tag = 'input window, operand 5, single buffered']
    #allocation11 [shape = 'u8[512]{0}', space=vmem, size = 0x400, scoped, tag = 'input window, operand 6, single buffered']
    #allocation12 [shape = 's32[1]{0}', space=sflag, size = 0x4, scoped, tag = 'scoped memory for sentiment_lstm_forward.1']
    #allocation13 [shape = 'u8[2048]{0}', space=vmem, size = 0x800, scoped, tag = 'input window, operand 7, single buffered']
    #allocation14 [shape = 'u8[2048]{0}', space=vmem, size = 0x800, scoped, tag = 'input window, operand 8, single buffered']
    #allocation15 [shape = 's32[1]{0}', space=sflag, size = 0x4, scoped, tag = 'scoped memory for sentiment_lstm_forward.1']
    #allocation16 [shape = 'u8[512]{0}', space=vmem, size = 0x400, scoped, tag = 'input window, operand 9, single buffered']
    #allocation17 [shape = 'u8[2048]{0}', space=vmem, size = 0x800, scoped, tag = 'output window, operand 1, single buffered']
    #allocation18 [shape = 'u8[2048]{0}', space=vmem, size = 0x800, scoped, tag = 'output window, operand 2, single buffered']
    #allocation19 [shape = 's32[1]{0}', space=sflag, size = 0x4, scoped, tag = 'scoped memory for sentiment_lstm_forward.1']
    %21 = vsyncpa [#allocation6], 0
    %22 = vsyncpa [#allocation4], 0
    %23 = vsyncpa [#allocation9], 0
    %24 = vsyncpa [#allocation12], 0
    %25 = vsyncpa [#allocation15], 0
    %26 = vsyncpa [#allocation5], 0
    %27 = vsyncpa [#allocation19], 0
    // Predicated region
    $region2: #{sentiment_lstm_forward.1} parent=1 // pred_check
      _
    $region3: #{sentiment_lstm_forward.1} parent=1 // pred_check_branch
      %29 = sbr.rel (0) target = $region5
    $region4: #{sentiment_lstm_forward.1} parent=1 // pred_region
      %s31 = ssub.s32 32, 32
      %32 = vsyncadd [#allocation6], %s31
      %s34 = sshll.u32 %s0, 4
      %s35 = int_to_ptr.vmem [resolvable:$true] %s34
      %37 = dma.vmem_to_smem %s35, 32, [#allocation3], [#allocation6]
    $region5: #{sentiment_lstm_forward.1} parent=1 // pred_fallthru
      _
    // Predicated region
    $region6: #{sentiment_lstm_forward.1} parent=1 // pred_check
      _
    $region7: #{sentiment_lstm_forward.1} parent=1 // pred_check_branch
      %39 = sbr.rel (0) target = $region9
    $region8: #{sentiment_lstm_forward.1} parent=1 // pred_region
      %s41 = ssub.s32 1664, 1664
      %42 = vsyncadd [#allocation4], %s41
      %s43 = sshll.u32 [#allocation7], 4
      %s44 = int_to_ptr.vmem [resolvable:$true] %s43
      %49 = dma.hbm_to_vmem [thread:$0]  %s1, 1664, %s44, [#allocation4], 128, 128, 8
    $region9: #{sentiment_lstm_forward.1} parent=1 // pred_fallthru
      _
    // Predicated region
    $region10: #{sentiment_lstm_forward.1} parent=1 // pred_check
      _
    $region11: #{sentiment_lstm_forward.1} parent=1 // pred_check_branch
      %51 = sbr.rel (0) target = $region13
    $region12: #{sentiment_lstm_forward.1} parent=1 // pred_region
      _
    $region13: #{sentiment_lstm_forward.1} parent=1 // pred_fallthru
      _
    // Predicated region
    $region14: #{sentiment_lstm_forward.1} parent=1 // pred_check
      _
    $region15: #{sentiment_lstm_forward.1} parent=1 // pred_check_branch
      %53 = sbr.rel (0) target = $region17
    $region16: #{sentiment_lstm_forward.1} parent=1 // pred_region
      %s55 = ssub.s32 16, 16
      %56 = vsyncadd [#allocation9], %s55
      %s58 = sshll.u32 [#allocation8], 4
      %s59 = int_to_ptr.vmem [resolvable:$true] %s58
      %61 = dma.hbm_to_vmem [thread:$0]  %s3, 16, %s59, [#allocation9]
    $region17: #{sentiment_lstm_forward.1} parent=1 // pred_fallthru
      _
    // Predicated region
    $region18: #{sentiment_lstm_forward.1} parent=1 // pred_check
      _
    $region19: #{sentiment_lstm_forward.1} parent=1 // pred_check_branch
      %63 = sbr.rel (0) target = $region21
    $region20: #{sentiment_lstm_forward.1} parent=1 // pred_region
      _
    $region21: #{sentiment_lstm_forward.1} parent=1 // pred_fallthru
      _
    // Predicated region
    $region22: #{sentiment_lstm_forward.1} parent=1 // pred_check
      _
    $region23: #{sentiment_lstm_forward.1} parent=1 // pred_check_branch
      %65 = sbr.rel (0) target = $region25
    $region24: #{sentiment_lstm_forward.1} parent=1 // pred_region
      %s67 = ssub.s32 256, 256
      %68 = vsyncadd [#allocation9], %s67
      %s69 = sshll.u32 [#allocation10], 4
      %s70 = int_to_ptr.vmem [resolvable:$true] %s69
      %75 = dma.hbm_to_vmem [thread:$0]  %s5, 256, %s70, [#allocation9], 64, 64, 4
    $region25: #{sentiment_lstm_forward.1} parent=1 // pred_fallthru
      _
    // Predicated region
    $region26: #{sentiment_lstm_forward.1} parent=1 // pred_check
      _
    $region27: #{sentiment_lstm_forward.1} parent=1 // pred_check_branch
      %77 = sbr.rel (0) target = $region29
    $region28: #{sentiment_lstm_forward.1} parent=1 // pred_region
      %s79 = ssub.s32 16, 16
      %80 = vsyncadd [#allocation12], %s79
      %s82 = sshll.u32 [#allocation11], 4
      %s83 = int_to_ptr.vmem [resolvable:$true] %s82
      %85 = dma.hbm_to_vmem [thread:$0]  %s6, 16, %s83, [#allocation12]
    $region29: #{sentiment_lstm_forward.1} parent=1 // pred_fallthru
      _
    // Predicated region
    $region30: #{sentiment_lstm_forward.1} parent=1 // pred_check
      _
    $region31: #{sentiment_lstm_forward.1} parent=1 // pred_check_branch
      %87 = sbr.rel (0) target = $region33
    $region32: #{sentiment_lstm_forward.1} parent=1 // pred_region
      %s89 = ssub.s32 64, 64
      %90 = vsyncadd [#allocation12], %s89
      %s91 = sshll.u32 [#allocation13], 4
      %s92 = int_to_ptr.vmem [resolvable:$true] %s91
      %97 = dma.hbm_to_vmem [thread:$0]  %s7, 64, %s92, [#allocation12], 32, 32, 2
    $region33: #{sentiment_lstm_forward.1} parent=1 // pred_fallthru
      _
    // Predicated region
    $region34: #{sentiment_lstm_forward.1} parent=1 // pred_check
      _
    $region35: #{sentiment_lstm_forward.1} parent=1 // pred_check_branch
      %99 = sbr.rel (0) target = $region37
    $region36: #{sentiment_lstm_forward.1} parent=1 // pred_region
      %s101 = ssub.s32 64, 64
      %102 = vsyncadd [#allocation15], %s101
      %s103 = sshll.u32 [#allocation14], 4
      %s104 = int_to_ptr.vmem [resolvable:$true] %s103
      %109 = dma.hbm_to_vmem [thread:$0]  %s8, 64, %s104, [#allocation15], 32, 32, 2
    $region37: #{sentiment_lstm_forward.1} parent=1 // pred_fallthru
      _
    // Predicated region
    $region38: #{sentiment_lstm_forward.1} parent=1 // pred_check
      _
    $region39: #{sentiment_lstm_forward.1} parent=1 // pred_check_branch
      %111 = sbr.rel (0) target = $region41
    $region40: #{sentiment_lstm_forward.1} parent=1 // pred_region
      %s113 = ssub.s32 16, 16
      %114 = vsyncadd [#allocation15], %s113
      %s116 = sshll.u32 [#allocation16], 4
      %s117 = int_to_ptr.vmem [resolvable:$true] %s116
      %119 = dma.hbm_to_vmem [thread:$0]  %s9, 16, %s117, [#allocation15]
    $region41: #{sentiment_lstm_forward.1} parent=1 // pred_fallthru
      _
    // Predicated region
    $region42: #{sentiment_lstm_forward.1} parent=1 // pred_check
      _
    $region43: #{sentiment_lstm_forward.1} parent=1 // pred_check_branch
      %121 = sbr.rel (0) target = $region45
    $region44: #{sentiment_lstm_forward.1} parent=1 // pred_region
      _
    $region45: #{sentiment_lstm_forward.1} parent=1 // pred_fallthru
      _
    // Predicated region
    $region46: #{sentiment_lstm_forward.1} parent=1 // pred_check
      _
    $region47: #{sentiment_lstm_forward.1} parent=1 // pred_check_branch
      %123 = sbr.rel (0) target = $region49
    $region48: #{sentiment_lstm_forward.1} parent=1 // pred_region
      %124 = dma.done [#allocation6], 32
    $region49: #{sentiment_lstm_forward.1} parent=1 // pred_fallthru
      _
    // Predicated region
    $region50: #{sentiment_lstm_forward.1} parent=1 // pred_check
      _
    $region51: #{sentiment_lstm_forward.1} parent=1 // pred_check_branch
      %126 = sbr.rel (0) target = $region53
    $region52: #{sentiment_lstm_forward.1} parent=1 // pred_region
      %127 = dma.done [#allocation4], 1664
    $region53: #{sentiment_lstm_forward.1} parent=1 // pred_fallthru
      _
    // Predicated region
    $region54: #{sentiment_lstm_forward.1} parent=1 // pred_check
      _
    $region55: #{sentiment_lstm_forward.1} parent=1 // pred_check_branch
      %129 = sbr.rel (0) target = $region57
    $region56: #{sentiment_lstm_forward.1} parent=1 // pred_region
      %130 = dma.done [#allocation9], 16
    $region57: #{sentiment_lstm_forward.1} parent=1 // pred_fallthru
      _
    // Predicated region
    $region58: #{sentiment_lstm_forward.1} parent=1 // pred_check
      _
    $region59: #{sentiment_lstm_forward.1} parent=1 // pred_check_branch
      %132 = sbr.rel (0) target = $region61
    $region60: #{sentiment_lstm_forward.1} parent=1 // pred_region
      %133 = dma.done [#allocation9], 256
    $region61: #{sentiment_lstm_forward.1} parent=1 // pred_fallthru
      _
    // Predicated region
    $region62: #{sentiment_lstm_forward.1} parent=1 // pred_check
      _
    $region63: #{sentiment_lstm_forward.1} parent=1 // pred_check_branch
      %135 = sbr.rel (0) target = $region65
    $region64: #{sentiment_lstm_forward.1} parent=1 // pred_region
      %136 = dma.done [#allocation12], 16
    $region65: #{sentiment_lstm_forward.1} parent=1 // pred_fallthru
      _
    // Predicated region
    $region66: #{sentiment_lstm_forward.1} parent=1 // pred_check
      _
    $region67: #{sentiment_lstm_forward.1} parent=1 // pred_check_branch
      %138 = sbr.rel (0) target = $region69
    $region68: #{sentiment_lstm_forward.1} parent=1 // pred_region
      %139 = dma.done [#allocation12], 64
    $region69: #{sentiment_lstm_forward.1} parent=1 // pred_fallthru
      _
    // Predicated region
    $region70: #{sentiment_lstm_forward.1} parent=1 // pred_check
      _
    $region71: #{sentiment_lstm_forward.1} parent=1 // pred_check_branch
      %141 = sbr.rel (0) target = $region73
    $region72: #{sentiment_lstm_forward.1} parent=1 // pred_region
      %142 = dma.done [#allocation15], 64
    $region73: #{sentiment_lstm_forward.1} parent=1 // pred_fallthru
      _
    // Predicated region
    $region74: #{sentiment_lstm_forward.1} parent=1 // pred_check
      _
    $region75: #{sentiment_lstm_forward.1} parent=1 // pred_check_branch
      %144 = sbr.rel (0) target = $region77
    $region76: #{sentiment_lstm_forward.1} parent=1 // pred_region
      %145 = dma.done [#allocation15], 16
    $region77: #{sentiment_lstm_forward.1} parent=1 // pred_fallthru
      _
    %146 = sfence
    %v148 = vld [vmem:[%s2] sm:$0xf]
    %v149 = vld [vmem:[%s2 + $0x4] sm:$0xf]
    %v150 = vld [vmem:[%s2 + $0x8] sm:$0xf]
    %v151 = vld [vmem:[%s2 + $0xc] sm:$0xf]
    %v152 = vld [vmem:[%s4] sm:$0xf]
    %v153 = vld [vmem:[%s4 + $0x4] sm:$0xf]
    %v154 = vld [vmem:[%s4 + $0x8] sm:$0xf]
    %v155 = vld [vmem:[%s4 + $0xc] sm:$0xf]
    %v156 = vld [vmem:[#allocation10] sm:$0xf]
    %v157 = vld [vmem:[#allocation10 + $0x4] sm:$0xf]
    %v158 = vld [vmem:[#allocation10 + $0x8] sm:$0xf]
    %v159 = vld [vmem:[#allocation10 + $0xc] sm:$0xf]
    %v160 = vld [vmem:[#allocation8] sm:$0x1]
    %v162 = vlaneseq
    %v163 = vshrl.u32 %v162, 7
    %v164 = vsub.s32 0, %v163
    %v165 = vrot.slane %v160, %v164
    %v167 = vld [vmem:[#allocation11] sm:$0x1]
    %v169 = vlaneseq
    %v170 = vshrl.u32 %v169, 7
    %v171 = vsub.s32 0, %v170
    %v172 = vrot.slane %v167, %v171
    %v174 = vld [vmem:[#allocation13] sm:$0x3]
    %v175 = vld [vmem:[#allocation14] sm:$0x3]
    %s176 = scalar_lea.vmem [#allocation13], 2
    %v177 = vld [vmem:[%s176] sm:$0x3]
    %s178 = scalar_lea.vmem [#allocation14], 2
    %v179 = vld [vmem:[%s178] sm:$0x3]
    %s180 = sld [smem:[#allocation3]]
    %s181 = scalar_lea.vmem [#allocation7], %s180
    %v182 = vld [vmem:[%s181] sm:$0x1]
    %s183 = sld [smem:[#allocation3 + $0x80]]
    %s184 = scalar_lea.vmem [#allocation7], %s183
    %v185 = vld [vmem:[%s184] sm:$0x1]
    %v187 = vrot.slane %v185, 7
    %vm189 = vcmask 1040384
    %v190 = vsel %vm189, %v182, %v187
    %v191 = vpack.c.bf16 %v174, %v174
    %v196 = vunpack.c.l.b16 %v148
    %v197 = vunpack.c.l.b16 %v149
    %v198 = vunpack.c.l.b16 %v150
    %v199 = vunpack.c.l.b16 %v151
    %v200 = vpack.c.b16 %v197, %v196
    %v201 = vpack.c.b16 %v199, %v198
    %vm204 = vcmask 261120
    %v206 = vsel %vm204, %v191, 0
    %208 = vmatprep.subr.bf16.mxu0 0
    %209 = vmatpush1.bf16.msra.mxu0 %v200
    %210 = vmatprep.subr.bf16.mxu0 0
    %211 = vmatpush1.bf16.msra.mxu0 %v201
    %212 = vmatprep.subr.bf16.mxu0 0
    %213 = vmatpush1.bf16.msra.mxu0 0
    %214 = vmatprep.subr.bf16.mxu0 0
    %215 = vmatpush1.bf16.msra.mxu0 0
    %216 = vmatprep.subr.bf16.mxu0 0
    %217 = vmatpush1.bf16.msra.mxu0 0
    %218 = vmatprep.subr.bf16.mxu0 0
    %219 = vmatpush1.bf16.msra.mxu0 0
    %220 = vmatprep.subr.bf16.mxu0 0
    %221 = vmatpush1.bf16.msra.mxu0 0
    %222 = vmatprep.subr.bf16.mxu0 0
    %223 = vmatpush1.bf16.msra.mxu0 0
    %224 = vmatprep.subr.bf16.mxu0 0
    %225 = vmatpush1.bf16.msra.mxu0 0
    %226 = vmatprep.subr.bf16.mxu0 0
    %227 = vmatpush1.bf16.msra.mxu0 0
    %228 = vmatprep.subr.bf16.mxu0 0
    %229 = vmatpush1.bf16.msra.mxu0 0
    %230 = vmatprep.subr.bf16.mxu0 0
    %231 = vmatpush1.bf16.msra.mxu0 0
    %232 = vmatprep.subr.bf16.mxu0 0
    %233 = vmatpush1.bf16.msra.mxu0 0
    %234 = vmatprep.subr.bf16.mxu0 0
    %235 = vmatpush1.bf16.msra.mxu0 0
    %236 = vmatprep.subr.bf16.mxu0 0
    %237 = vmatpush1.bf16.msra.mxu0 0
    %238 = vmatprep.subr.bf16.mxu0 0
    %239 = vmatpush1.bf16.msra.mxu0 0
    %240 = vmatprep.mubr.bf16.mxu0 0
    %241 = vmatmul.mubr.bf16.gmra.mrb[0].mxu0 %v206
    %v242 = vpop.f32.mrb[0].mxu0
    %v243 = vadd.f32 0.0, %v242
    %v244 = vpop.f32.mrb[0].mxu0
    %v245 = vpop.f32.mrb[0].mxu0
    %v246 = vpop.f32.mrb[0].mxu0
    %247 = vdwg.mxu0
    %v248 = vadd.f32 %v190, %v243
    %v249 = vadd.f32 %v248, %v165
    %v250 = vxor.u32 %v249, 2147483648
    %v251 = vmul.f32 %v250, 1.442695
    %v252 = vpow.pop %v251
    %v253 = vadd.f32 %v252, 1.0
    %v254 = vrcp.pop %v253
    %v255 = vmul.f32 1.0, %v254
    %v256 = vtanh.pop %v249
    %258 = vrot.lane.b32.xlu0 %v175, 32
    %v259 = vpop.permute.xlu0 %258
    %v261 = vmul.f32 %v255, %v259
    %263 = vrot.lane.b32.xlu0 %v256, 64
    %v264 = vpop.permute.xlu0 %263
    %v266 = vmul.f32 %v255, %v264
    %268 = vrot.lane.b32.xlu0 %v266, 32
    %v269 = vpop.permute.xlu0 %268
    %v271 = vadd.f32 %v261, %v269
    %v272 = vtanh.pop %v271
    %274 = vrot.lane.b32.xlu0 %v272, 64
    %v275 = vpop.permute.xlu0 %274
    %v277 = vmul.f32 %v255, %v275
    %v278 = vpack.c.bf16 %v277, %v277
    %v279 = vpack.c.bf16 %v177, %v177
    %v284 = vunpack.c.l.b16 %v156
    %v285 = vunpack.c.l.b16 %v157
    %v286 = vunpack.c.l.b16 %v158
    %v287 = vunpack.c.l.b16 %v159
    %v288 = vpack.c.b16 %v285, %v284
    %v289 = vpack.c.b16 %v287, %v286
    %v293 = vsel %vm204, %v279, 0
    %295 = vmatprep.subr.bf16.mxu0 0
    %296 = vmatpush1.bf16.msra.mxu0 %v288
    %297 = vmatprep.subr.bf16.mxu0 0
    %298 = vmatpush1.bf16.msra.mxu0 %v289
    %299 = vmatprep.subr.bf16.mxu0 0
    %300 = vmatpush1.bf16.msra.mxu0 0
    %301 = vmatprep.subr.bf16.mxu0 0
    %302 = vmatpush1.bf16.msra.mxu0 0
    %303 = vmatprep.subr.bf16.mxu0 0
    %304 = vmatpush1.bf16.msra.mxu0 0
    %305 = vmatprep.subr.bf16.mxu0 0
    %306 = vmatpush1.bf16.msra.mxu0 0
    %307 = vmatprep.subr.bf16.mxu0 0
    %308 = vmatpush1.bf16.msra.mxu0 0
    %309 = vmatprep.subr.bf16.mxu0 0
    %310 = vmatpush1.bf16.msra.mxu0 0
    %311 = vmatprep.subr.bf16.mxu0 0
    %312 = vmatpush1.bf16.msra.mxu0 0
    %313 = vmatprep.subr.bf16.mxu0 0
    %314 = vmatpush1.bf16.msra.mxu0 0
    %315 = vmatprep.subr.bf16.mxu0 0
    %316 = vmatpush1.bf16.msra.mxu0 0
    %317 = vmatprep.subr.bf16.mxu0 0
    %318 = vmatpush1.bf16.msra.mxu0 0
    %319 = vmatprep.subr.bf16.mxu0 0
    %320 = vmatpush1.bf16.msra.mxu0 0
    %321 = vmatprep.subr.bf16.mxu0 0
    %322 = vmatpush1.bf16.msra.mxu0 0
    %323 = vmatprep.subr.bf16.mxu0 0
    %324 = vmatpush1.bf16.msra.mxu0 0
    %325 = vmatprep.subr.bf16.mxu0 0
    %326 = vmatpush1.bf16.msra.mxu0 0
    %327 = vmatprep.mubr.bf16.mxu0 0
    %328 = vmatmul.mubr.bf16.gmra.mrb[0].mxu0 %v293
    %v329 = vpop.f32.mrb[0].mxu0
    %v330 = vadd.f32 0.0, %v329
    %v331 = vpop.f32.mrb[0].mxu0
    %v332 = vpop.f32.mrb[0].mxu0
    %v333 = vpop.f32.mrb[0].mxu0
    %334 = vdwg.mxu0
    %336 = vrot.lane.b32.xlu0 %v278, 32
    %v337 = vpop.permute.xlu0 %336
    %v342 = vunpack.c.l.b16 %v152
    %v343 = vunpack.c.l.b16 %v153
    %v344 = vunpack.c.l.b16 %v154
    %v345 = vunpack.c.l.b16 %v155
    %v346 = vpack.c.b16 %v343, %v342
    %v347 = vpack.c.b16 %v345, %v344
    %v351 = vsel %vm204, %v337, 0
    %353 = vmatprep.subr.bf16.mxu0 0
    %354 = vmatpush1.bf16.msra.mxu0 %v346
    %355 = vmatprep.subr.bf16.mxu0 0
    %356 = vmatpush1.bf16.msra.mxu0 %v347
    %357 = vmatprep.subr.bf16.mxu0 0
    %358 = vmatpush1.bf16.msra.mxu0 0
    %359 = vmatprep.subr.bf16.mxu0 0
    %360 = vmatpush1.bf16.msra.mxu0 0
    %361 = vmatprep.subr.bf16.mxu0 0
    %362 = vmatpush1.bf16.msra.mxu0 0
    %363 = vmatprep.subr.bf16.mxu0 0
    %364 = vmatpush1.bf16.msra.mxu0 0
    %365 = vmatprep.subr.bf16.mxu0 0
    %366 = vmatpush1.bf16.msra.mxu0 0
    %367 = vmatprep.subr.bf16.mxu0 0
    %368 = vmatpush1.bf16.msra.mxu0 0
    %369 = vmatprep.subr.bf16.mxu0 0
    %370 = vmatpush1.bf16.msra.mxu0 0
    %371 = vmatprep.subr.bf16.mxu0 0
    %372 = vmatpush1.bf16.msra.mxu0 0
    %373 = vmatprep.subr.bf16.mxu0 0
    %374 = vmatpush1.bf16.msra.mxu0 0
    %375 = vmatprep.subr.bf16.mxu0 0
    %376 = vmatpush1.bf16.msra.mxu0 0
    %377 = vmatprep.subr.bf16.mxu0 0
    %378 = vmatpush1.bf16.msra.mxu0 0
    %379 = vmatprep.subr.bf16.mxu0 0
    %380 = vmatpush1.bf16.msra.mxu0 0
    %381 = vmatprep.subr.bf16.mxu0 0
    %382 = vmatpush1.bf16.msra.mxu0 0
    %383 = vmatprep.subr.bf16.mxu0 0
    %384 = vmatpush1.bf16.msra.mxu0 0
    %385 = vmatprep.mubr.bf16.mxu0 0
    %386 = vmatmul.mubr.bf16.gmra.mrb[0].mxu0 %v351
    %v387 = vpop.f32.mrb[0].mxu0
    %v388 = vadd.f32 %v330, %v387
    %v389 = vpop.f32.mrb[0].mxu0
    %v390 = vpop.f32.mrb[0].mxu0
    %v391 = vpop.f32.mrb[0].mxu0
    %392 = vdwg.mxu0
    %v393 = vadd.f32 %v388, %v172
    %v394 = vxor.u32 %v393, 2147483648
    %v395 = vmul.f32 %v394, 1.442695
    %v396 = vpow.pop %v395
    %v397 = vadd.f32 %v396, 1.0
    %v398 = vrcp.pop %v397
    %v399 = vmul.f32 1.0, %v398
    %v400 = vtanh.pop %v393
    %402 = vrot.lane.b32.xlu0 %v179, 32
    %v403 = vpop.permute.xlu0 %402
    %v405 = vmul.f32 %v399, %v403
    %407 = vrot.lane.b32.xlu0 %v400, 64
    %v408 = vpop.permute.xlu0 %407
    %v410 = vmul.f32 %v399, %v408
    %412 = vrot.lane.b32.xlu0 %v410, 32
    %v413 = vpop.permute.xlu0 %412
    %v415 = vadd.f32 %v405, %v413
    %v416 = vtanh.pop %v415
    %418 = vrot.lane.b32.xlu0 %v416, 64
    %v419 = vpop.permute.xlu0 %418
    %v421 = vmul.f32 %v399, %v419
    %s422 = sld [smem:[#allocation3 + $0x1]]
    %s423 = scalar_lea.vmem [#allocation7], %s422
    %v424 = vld [vmem:[%s423] sm:$0x1]
    %s425 = sld [smem:[#allocation3 + $0x81]]
    %s426 = scalar_lea.vmem [#allocation7], %s425
    %v427 = vld [vmem:[%s426] sm:$0x1]
    %v429 = vrot.slane %v427, 7
    %v431 = vsel %vm189, %v424, %v429
    %432 = vmatprep.subr.bf16.mxu0 0
    %433 = vmatpush1.bf16.msra.mxu0 %v200
    %434 = vmatprep.subr.bf16.mxu0 0
    %435 = vmatpush1.bf16.msra.mxu0 %v201
    %436 = vmatprep.subr.bf16.mxu0 0
    %437 = vmatpush1.bf16.msra.mxu0 0
    %438 = vmatprep.subr.bf16.mxu0 0
    %439 = vmatpush1.bf16.msra.mxu0 0
    %440 = vmatprep.subr.bf16.mxu0 0
    %441 = vmatpush1.bf16.msra.mxu0 0
    %442 = vmatprep.subr.bf16.mxu0 0
    %443 = vmatpush1.bf16.msra.mxu0 0
    %444 = vmatprep.subr.bf16.mxu0 0
    %445 = vmatpush1.bf16.msra.mxu0 0
    %446 = vmatprep.subr.bf16.mxu0 0
    %447 = vmatpush1.bf16.msra.mxu0 0
    %448 = vmatprep.subr.bf16.mxu0 0
    %449 = vmatpush1.bf16.msra.mxu0 0
    %450 = vmatprep.subr.bf16.mxu0 0
    %451 = vmatpush1.bf16.msra.mxu0 0
    %452 = vmatprep.subr.bf16.mxu0 0
    %453 = vmatpush1.bf16.msra.mxu0 0
    %454 = vmatprep.subr.bf16.mxu0 0
    %455 = vmatpush1.bf16.msra.mxu0 0
    %456 = vmatprep.subr.bf16.mxu0 0
    %457 = vmatpush1.bf16.msra.mxu0 0
    %458 = vmatprep.subr.bf16.mxu0 0
    %459 = vmatpush1.bf16.msra.mxu0 0
    %460 = vmatprep.subr.bf16.mxu0 0
    %461 = vmatpush1.bf16.msra.mxu0 0
    %462 = vmatprep.subr.bf16.mxu0 0
    %463 = vmatpush1.bf16.msra.mxu0 0
    %464 = vmatprep.mubr.bf16.mxu0 0
    %465 = vmatmul.mubr.bf16.gmra.mrb[0].mxu0 %v351
    %v466 = vpop.f32.mrb[0].mxu0
    %v467 = vadd.f32 0.0, %v466
    %v468 = vpop.f32.mrb[0].mxu0
    %v469 = vpop.f32.mrb[0].mxu0
    %v470 = vpop.f32.mrb[0].mxu0
    %471 = vdwg.mxu0
    %v472 = vadd.f32 %v431, %v467
    %v473 = vadd.f32 %v472, %v165
    %v474 = vxor.u32 %v473, 2147483648
    %v475 = vmul.f32 %v474, 1.442695
    %v476 = vpow.pop %v475
    %v477 = vadd.f32 %v476, 1.0
    %v478 = vrcp.pop %v477
    %v479 = vmul.f32 1.0, %v478
    %v480 = vtanh.pop %v473
    %v481 = vmul.f32 %v479, %v271
    %483 = vrot.lane.b32.xlu0 %v480, 64
    %v484 = vpop.permute.xlu0 %483
    %v486 = vmul.f32 %v479, %v484
    %488 = vrot.lane.b32.xlu0 %v486, 32
    %v489 = vpop.permute.xlu0 %488
    %v491 = vadd.f32 %v481, %v489
    %v492 = vtanh.pop %v491
    %494 = vrot.lane.b32.xlu0 %v492, 64
    %v495 = vpop.permute.xlu0 %494
    %v497 = vmul.f32 %v479, %v495
    %v498 = vpack.c.bf16 %v497, %v497
    %v499 = vpack.c.bf16 %v421, %v421
    %501 = vrot.lane.b32.xlu0 %v499, 32
    %v502 = vpop.permute.xlu0 %501
    %v504 = vsel %vm204, %v502, 0
    %506 = vmatprep.subr.bf16.mxu0 0
    %507 = vmatpush1.bf16.msra.mxu0 %v288
    %508 = vmatprep.subr.bf16.mxu0 0
    %509 = vmatpush1.bf16.msra.mxu0 %v289
    %510 = vmatprep.subr.bf16.mxu0 0
    %511 = vmatpush1.bf16.msra.mxu0 0
    %512 = vmatprep.subr.bf16.mxu0 0
    %513 = vmatpush1.bf16.msra.mxu0 0
    %514 = vmatprep.subr.bf16.mxu0 0
    %515 = vmatpush1.bf16.msra.mxu0 0
    %516 = vmatprep.subr.bf16.mxu0 0
    %517 = vmatpush1.bf16.msra.mxu0 0
    %518 = vmatprep.subr.bf16.mxu0 0
    %519 = vmatpush1.bf16.msra.mxu0 0
    %520 = vmatprep.subr.bf16.mxu0 0
    %521 = vmatpush1.bf16.msra.mxu0 0
    %522 = vmatprep.subr.bf16.mxu0 0
    %523 = vmatpush1.bf16.msra.mxu0 0
    %524 = vmatprep.subr.bf16.mxu0 0
    %525 = vmatpush1.bf16.msra.mxu0 0
    %526 = vmatprep.subr.bf16.mxu0 0
    %527 = vmatpush1.bf16.msra.mxu0 0
    %528 = vmatprep.subr.bf16.mxu0 0
    %529 = vmatpush1.bf16.msra.mxu0 0
    %530 = vmatprep.subr.bf16.mxu0 0
    %531 = vmatpush1.bf16.msra.mxu0 0
    %532 = vmatprep.subr.bf16.mxu0 0
    %533 = vmatpush1.bf16.msra.mxu0 0
    %534 = vmatprep.subr.bf16.mxu0 0
    %535 = vmatpush1.bf16.msra.mxu0 0
    %536 = vmatprep.subr.bf16.mxu0 0
    %537 = vmatpush1.bf16.msra.mxu0 0
    %538 = vmatprep.mubr.bf16.mxu0 0
    %539 = vmatmul.mubr.bf16.gmra.mrb[0].mxu0 %v504
    %v540 = vpop.f32.mrb[0].mxu0
    %v541 = vadd.f32 0.0, %v540
    %v542 = vpop.f32.mrb[0].mxu0
    %v543 = vpop.f32.mrb[0].mxu0
    %v544 = vpop.f32.mrb[0].mxu0
    %545 = vdwg.mxu0
    %547 = vrot.lane.b32.xlu0 %v498, 32
    %v548 = vpop.permute.xlu0 %547
    %v550 = vsel %vm204, %v548, 0
    %552 = vmatprep.subr.bf16.mxu0 0
    %553 = vmatpush1.bf16.msra.mxu0 %v346
    %554 = vmatprep.subr.bf16.mxu0 0
    %555 = vmatpush1.bf16.msra.mxu0 %v347
    %556 = vmatprep.subr.bf16.mxu0 0
    %557 = vmatpush1.bf16.msra.mxu0 0
    %558 = vmatprep.subr.bf16.mxu0 0
    %559 = vmatpush1.bf16.msra.mxu0 0
    %560 = vmatprep.subr.bf16.mxu0 0
    %561 = vmatpush1.bf16.msra.mxu0 0
    %562 = vmatprep.subr.bf16.mxu0 0
    %563 = vmatpush1.bf16.msra.mxu0 0
    %564 = vmatprep.subr.bf16.mxu0 0
    %565 = vmatpush1.bf16.msra.mxu0 0
    %566 = vmatprep.subr.bf16.mxu0 0
    %567 = vmatpush1.bf16.msra.mxu0 0
    %568 = vmatprep.subr.bf16.mxu0 0
    %569 = vmatpush1.bf16.msra.mxu0 0
    %570 = vmatprep.subr.bf16.mxu0 0
    %571 = vmatpush1.bf16.msra.mxu0 0
    %572 = vmatprep.subr.bf16.mxu0 0
    %573 = vmatpush1.bf16.msra.mxu0 0
    %574 = vmatprep.subr.bf16.mxu0 0
    %575 = vmatpush1.bf16.msra.mxu0 0
    %576 = vmatprep.subr.bf16.mxu0 0
    %577 = vmatpush1.bf16.msra.mxu0 0
    %578 = vmatprep.subr.bf16.mxu0 0
    %579 = vmatpush1.bf16.msra.mxu0 0
    %580 = vmatprep.subr.bf16.mxu0 0
    %581 = vmatpush1.bf16.msra.mxu0 0
    %582 = vmatprep.subr.bf16.mxu0 0
    %583 = vmatpush1.bf16.msra.mxu0 0
    %584 = vmatprep.mubr.bf16.mxu0 0
    %585 = vmatmul.mubr.bf16.gmra.mrb[0].mxu0 %v550
    %v586 = vpop.f32.mrb[0].mxu0
    %v587 = vadd.f32 %v541, %v586
    %v588 = vpop.f32.mrb[0].mxu0
    %v589 = vpop.f32.mrb[0].mxu0
    %v590 = vpop.f32.mrb[0].mxu0
    %591 = vdwg.mxu0
    %v592 = vadd.f32 %v587, %v172
    %v593 = vxor.u32 %v592, 2147483648
    %v594 = vmul.f32 %v593, 1.442695
    %v595 = vpow.pop %v594
    %v596 = vadd.f32 %v595, 1.0
    %v597 = vrcp.pop %v596
    %v598 = vmul.f32 1.0, %v597
    %v599 = vtanh.pop %v592
    %v600 = vmul.f32 %v598, %v415
    %602 = vrot.lane.b32.xlu0 %v599, 64
    %v603 = vpop.permute.xlu0 %602
    %v605 = vmul.f32 %v598, %v603
    %607 = vrot.lane.b32.xlu0 %v605, 32
    %v608 = vpop.permute.xlu0 %607
    %v610 = vadd.f32 %v600, %v608
    %v611 = vtanh.pop %v610
    %613 = vrot.lane.b32.xlu0 %v611, 64
    %v614 = vpop.permute.xlu0 %613
    %v616 = vmul.f32 %v598, %v614
    %s617 = sld [smem:[#allocation3 + $0x2]]
    %s618 = scalar_lea.vmem [#allocation7], %s617
    %v619 = vld [vmem:[%s618] sm:$0x1]
    %s620 = sld [smem:[#allocation3 + $0x82]]
    %s621 = scalar_lea.vmem [#allocation7], %s620
    %v622 = vld [vmem:[%s621] sm:$0x1]
    %v624 = vrot.slane %v622, 7
    %v626 = vsel %vm189, %v619, %v624
    %627 = vmatprep.subr.bf16.mxu0 0
    %628 = vmatpush1.bf16.msra.mxu0 %v200
    %629 = vmatprep.subr.bf16.mxu0 0
    %630 = vmatpush1.bf16.msra.mxu0 %v201
    %631 = vmatprep.subr.bf16.mxu0 0
    %632 = vmatpush1.bf16.msra.mxu0 0
    %633 = vmatprep.subr.bf16.mxu0 0
    %634 = vmatpush1.bf16.msra.mxu0 0
    %635 = vmatprep.subr.bf16.mxu0 0
    %636 = vmatpush1.bf16.msra.mxu0 0
    %637 = vmatprep.subr.bf16.mxu0 0
    %638 = vmatpush1.bf16.msra.mxu0 0
    %639 = vmatprep.subr.bf16.mxu0 0
    %640 = vmatpush1.bf16.msra.mxu0 0
    %641 = vmatprep.subr.bf16.mxu0 0
    %642 = vmatpush1.bf16.msra.mxu0 0
    %643 = vmatprep.subr.bf16.mxu0 0
    %644 = vmatpush1.bf16.msra.mxu0 0
    %645 = vmatprep.subr.bf16.mxu0 0
    %646 = vmatpush1.bf16.msra.mxu0 0
    %647 = vmatprep.subr.bf16.mxu0 0
    %648 = vmatpush1.bf16.msra.mxu0 0
    %649 = vmatprep.subr.bf16.mxu0 0
    %650 = vmatpush1.bf16.msra.mxu0 0
    %651 = vmatprep.subr.bf16.mxu0 0
    %652 = vmatpush1.bf16.msra.mxu0 0
    %653 = vmatprep.subr.bf16.mxu0 0
    %654 = vmatpush1.bf16.msra.mxu0 0
    %655 = vmatprep.subr.bf16.mxu0 0
    %656 = vmatpush1.bf16.msra.mxu0 0
    %657 = vmatprep.subr.bf16.mxu0 0
    %658 = vmatpush1.bf16.msra.mxu0 0
    %659 = vmatprep.mubr.bf16.mxu0 0
    %660 = vmatmul.mubr.bf16.gmra.mrb[0].mxu0 %v550
    %v661 = vpop.f32.mrb[0].mxu0
    %v662 = vadd.f32 0.0, %v661
    %v663 = vpop.f32.mrb[0].mxu0
    %v664 = vpop.f32.mrb[0].mxu0
    %v665 = vpop.f32.mrb[0].mxu0
    %666 = vdwg.mxu0
    %v667 = vadd.f32 %v626, %v662
    %v668 = vadd.f32 %v667, %v165
    %v669 = vxor.u32 %v668, 2147483648
    %v670 = vmul.f32 %v669, 1.442695
    %v671 = vpow.pop %v670
    %v672 = vadd.f32 %v671, 1.0
    %v673 = vrcp.pop %v672
    %v674 = vmul.f32 1.0, %v673
    %v675 = vtanh.pop %v668
    %v676 = vmul.f32 %v674, %v491
    %678 = vrot.lane.b32.xlu0 %v675, 64
    %v679 = vpop.permute.xlu0 %678
    %v681 = vmul.f32 %v674, %v679
    %683 = vrot.lane.b32.xlu0 %v681, 32
    %v684 = vpop.permute.xlu0 %683
    %v686 = vadd.f32 %v676, %v684
    %v687 = vtanh.pop %v686
    %689 = vrot.lane.b32.xlu0 %v687, 64
    %v690 = vpop.permute.xlu0 %689
    %v692 = vmul.f32 %v674, %v690
    %v693 = vpack.c.bf16 %v692, %v692
    %v694 = vpack.c.bf16 %v616, %v616
    %696 = vrot.lane.b32.xlu0 %v694, 32
    %v697 = vpop.permute.xlu0 %696
    %v699 = vsel %vm204, %v697, 0
    %701 = vmatprep.subr.bf16.mxu0 0
    %702 = vmatpush1.bf16.msra.mxu0 %v288
    %703 = vmatprep.subr.bf16.mxu0 0
    %704 = vmatpush1.bf16.msra.mxu0 %v289
    %705 = vmatprep.subr.bf16.mxu0 0
    %706 = vmatpush1.bf16.msra.mxu0 0
    %707 = vmatprep.subr.bf16.mxu0 0
    %708 = vmatpush1.bf16.msra.mxu0 0
    %709 = vmatprep.subr.bf16.mxu0 0
    %710 = vmatpush1.bf16.msra.mxu0 0
    %711 = vmatprep.subr.bf16.mxu0 0
    %712 = vmatpush1.bf16.msra.mxu0 0
    %713 = vmatprep.subr.bf16.mxu0 0
    %714 = vmatpush1.bf16.msra.mxu0 0
    %715 = vmatprep.subr.bf16.mxu0 0
    %716 = vmatpush1.bf16.msra.mxu0 0
    %717 = vmatprep.subr.bf16.mxu0 0
    %718 = vmatpush1.bf16.msra.mxu0 0
    %719 = vmatprep.subr.bf16.mxu0 0
    %720 = vmatpush1.bf16.msra.mxu0 0
    %721 = vmatprep.subr.bf16.mxu0 0
    %722 = vmatpush1.bf16.msra.mxu0 0
    %723 = vmatprep.subr.bf16.mxu0 0
    %724 = vmatpush1.bf16.msra.mxu0 0
    %725 = vmatprep.subr.bf16.mxu0 0
    %726 = vmatpush1.bf16.msra.mxu0 0
    %727 = vmatprep.subr.bf16.mxu0 0
    %728 = vmatpush1.bf16.msra.mxu0 0
    %729 = vmatprep.subr.bf16.mxu0 0
    %730 = vmatpush1.bf16.msra.mxu0 0
    %731 = vmatprep.subr.bf16.mxu0 0
    %732 = vmatpush1.bf16.msra.mxu0 0
    %733 = vmatprep.mubr.bf16.mxu0 0
    %734 = vmatmul.mubr.bf16.gmra.mrb[0].mxu0 %v699
    %v735 = vpop.f32.mrb[0].mxu0
    %v736 = vadd.f32 0.0, %v735
    %v737 = vpop.f32.mrb[0].mxu0
    %v738 = vpop.f32.mrb[0].mxu0
    %v739 = vpop.f32.mrb[0].mxu0
    %740 = vdwg.mxu0
    %742 = vrot.lane.b32.xlu0 %v693, 32
    %v743 = vpop.permute.xlu0 %742
    %v745 = vsel %vm204, %v743, 0
    %747 = vmatprep.subr.bf16.mxu0 0
    %748 = vmatpush1.bf16.msra.mxu0 %v346
    %749 = vmatprep.subr.bf16.mxu0 0
    %750 = vmatpush1.bf16.msra.mxu0 %v347
    %751 = vmatprep.subr.bf16.mxu0 0
    %752 = vmatpush1.bf16.msra.mxu0 0
    %753 = vmatprep.subr.bf16.mxu0 0
    %754 = vmatpush1.bf16.msra.mxu0 0
    %755 = vmatprep.subr.bf16.mxu0 0
    %756 = vmatpush1.bf16.msra.mxu0 0
    %757 = vmatprep.subr.bf16.mxu0 0
    %758 = vmatpush1.bf16.msra.mxu0 0
    %759 = vmatprep.subr.bf16.mxu0 0
    %760 = vmatpush1.bf16.msra.mxu0 0
    %761 = vmatprep.subr.bf16.mxu0 0
    %762 = vmatpush1.bf16.msra.mxu0 0
    %763 = vmatprep.subr.bf16.mxu0 0
    %764 = vmatpush1.bf16.msra.mxu0 0
    %765 = vmatprep.subr.bf16.mxu0 0
    %766 = vmatpush1.bf16.msra.mxu0 0
    %767 = vmatprep.subr.bf16.mxu0 0
    %768 = vmatpush1.bf16.msra.mxu0 0
    %769 = vmatprep.subr.bf16.mxu0 0
    %770 = vmatpush1.bf16.msra.mxu0 0
    %771 = vmatprep.subr.bf16.mxu0 0
    %772 = vmatpush1.bf16.msra.mxu0 0
    %773 = vmatprep.subr.bf16.mxu0 0
    %774 = vmatpush1.bf16.msra.mxu0 0
    %775 = vmatprep.subr.bf16.mxu0 0
    %776 = vmatpush1.bf16.msra.mxu0 0
    %777 = vmatprep.subr.bf16.mxu0 0
    %778 = vmatpush1.bf16.msra.mxu0 0
    %779 = vmatprep.mubr.bf16.mxu0 0
    %780 = vmatmul.mubr.bf16.gmra.mrb[0].mxu0 %v745
    %v781 = vpop.f32.mrb[0].mxu0
    %v782 = vadd.f32 %v736, %v781
    %v783 = vpop.f32.mrb[0].mxu0
    %v784 = vpop.f32.mrb[0].mxu0
    %v785 = vpop.f32.mrb[0].mxu0
    %786 = vdwg.mxu0
    %v787 = vadd.f32 %v782, %v172
    %v788 = vxor.u32 %v787, 2147483648
    %v789 = vmul.f32 %v788, 1.442695
    %v790 = vpow.pop %v789
    %v791 = vadd.f32 %v790, 1.0
    %v792 = vrcp.pop %v791
    %v793 = vmul.f32 1.0, %v792
    %v794 = vtanh.pop %v787
    %v795 = vmul.f32 %v793, %v610
    %797 = vrot.lane.b32.xlu0 %v794, 64
    %v798 = vpop.permute.xlu0 %797
    %v800 = vmul.f32 %v793, %v798
    %802 = vrot.lane.b32.xlu0 %v800, 32
    %v803 = vpop.permute.xlu0 %802
    %v805 = vadd.f32 %v795, %v803
    %v806 = vtanh.pop %v805
    %808 = vrot.lane.b32.xlu0 %v806, 64
    %v809 = vpop.permute.xlu0 %808
    %v811 = vmul.f32 %v793, %v809
    %s812 = sld [smem:[#allocation3 + $0x3]]
    %s813 = scalar_lea.vmem [#allocation7], %s812
    %v814 = vld [vmem:[%s813] sm:$0x1]
    %s815 = sld [smem:[#allocation3 + $0x83]]
    %s816 = scalar_lea.vmem [#allocation7], %s815
    %v817 = vld [vmem:[%s816] sm:$0x1]
    %v819 = vrot.slane %v817, 7
    %v821 = vsel %vm189, %v814, %v819
    %822 = vmatprep.subr.bf16.mxu0 0
    %823 = vmatpush1.bf16.msra.mxu0 %v200
    %824 = vmatprep.subr.bf16.mxu0 0
    %825 = vmatpush1.bf16.msra.mxu0 %v201
    %826 = vmatprep.subr.bf16.mxu0 0
    %827 = vmatpush1.bf16.msra.mxu0 0
    %828 = vmatprep.subr.bf16.mxu0 0
    %829 = vmatpush1.bf16.msra.mxu0 0
    %830 = vmatprep.subr.bf16.mxu0 0
    %831 = vmatpush1.bf16.msra.mxu0 0
    %832 = vmatprep.subr.bf16.mxu0 0
    %833 = vmatpush1.bf16.msra.mxu0 0
    %834 = vmatprep.subr.bf16.mxu0 0
    %835 = vmatpush1.bf16.msra.mxu0 0
    %836 = vmatprep.subr.bf16.mxu0 0
    %837 = vmatpush1.bf16.msra.mxu0 0
    %838 = vmatprep.subr.bf16.mxu0 0
    %839 = vmatpush1.bf16.msra.mxu0 0
    %840 = vmatprep.subr.bf16.mxu0 0
    %841 = vmatpush1.bf16.msra.mxu0 0
    %842 = vmatprep.subr.bf16.mxu0 0
    %843 = vmatpush1.bf16.msra.mxu0 0
    %844 = vmatprep.subr.bf16.mxu0 0
    %845 = vmatpush1.bf16.msra.mxu0 0
    %846 = vmatprep.subr.bf16.mxu0 0
    %847 = vmatpush1.bf16.msra.mxu0 0
    %848 = vmatprep.subr.bf16.mxu0 0
    %849 = vmatpush1.bf16.msra.mxu0 0
    %850 = vmatprep.subr.bf16.mxu0 0
    %851 = vmatpush1.bf16.msra.mxu0 0
    %852 = vmatprep.subr.bf16.mxu0 0
    %853 = vmatpush1.bf16.msra.mxu0 0
    %854 = vmatprep.mubr.bf16.mxu0 0
    %855 = vmatmul.mubr.bf16.gmra.mrb[0].mxu0 %v745
    %v856 = vpop.f32.mrb[0].mxu0
    %v857 = vadd.f32 0.0, %v856
    %v858 = vpop.f32.mrb[0].mxu0
    %v859 = vpop.f32.mrb[0].mxu0
    %v860 = vpop.f32.mrb[0].mxu0
    %861 = vdwg.mxu0
    %v862 = vadd.f32 %v821, %v857
    %v863 = vadd.f32 %v862, %v165
    %v864 = vxor.u32 %v863, 2147483648
    %v865 = vmul.f32 %v864, 1.442695
    %v866 = vpow.pop %v865
    %v867 = vadd.f32 %v866, 1.0
    %v868 = vrcp.pop %v867
    %v869 = vmul.f32 1.0, %v868
    %v870 = vtanh.pop %v863
    %v871 = vmul.f32 %v869, %v686
    %873 = vrot.lane.b32.xlu0 %v870, 64
    %v874 = vpop.permute.xlu0 %873
    %v876 = vmul.f32 %v869, %v874
    %878 = vrot.lane.b32.xlu0 %v876, 32
    %v879 = vpop.permute.xlu0 %878
    %v881 = vadd.f32 %v871, %v879
    %v882 = vtanh.pop %v881
    %884 = vrot.lane.b32.xlu0 %v882, 64
    %v885 = vpop.permute.xlu0 %884
    %v887 = vmul.f32 %v869, %v885
    %v888 = vpack.c.bf16 %v887, %v887
    %v889 = vpack.c.bf16 %v811, %v811
    %891 = vrot.lane.b32.xlu0 %v889, 32
    %v892 = vpop.permute.xlu0 %891
    %v894 = vsel %vm204, %v892, 0
    %896 = vmatprep.subr.bf16.mxu0 0
    %897 = vmatpush1.bf16.msra.mxu0 %v288
    %898 = vmatprep.subr.bf16.mxu0 0
    %899 = vmatpush1.bf16.msra.mxu0 %v289
    %900 = vmatprep.subr.bf16.mxu0 0
    %901 = vmatpush1.bf16.msra.mxu0 0
    %902 = vmatprep.subr.bf16.mxu0 0
    %903 = vmatpush1.bf16.msra.mxu0 0
    %904 = vmatprep.subr.bf16.mxu0 0
    %905 = vmatpush1.bf16.msra.mxu0 0
    %906 = vmatprep.subr.bf16.mxu0 0
    %907 = vmatpush1.bf16.msra.mxu0 0
    %908 = vmatprep.subr.bf16.mxu0 0
    %909 = vmatpush1.bf16.msra.mxu0 0
    %910 = vmatprep.subr.bf16.mxu0 0
    %911 = vmatpush1.bf16.msra.mxu0 0
    %912 = vmatprep.subr.bf16.mxu0 0
    %913 = vmatpush1.bf16.msra.mxu0 0
    %914 = vmatprep.subr.bf16.mxu0 0
    %915 = vmatpush1.bf16.msra.mxu0 0
    %916 = vmatprep.subr.bf16.mxu0 0
    %917 = vmatpush1.bf16.msra.mxu0 0
    %918 = vmatprep.subr.bf16.mxu0 0
    %919 = vmatpush1.bf16.msra.mxu0 0
    %920 = vmatprep.subr.bf16.mxu0 0
    %921 = vmatpush1.bf16.msra.mxu0 0
    %922 = vmatprep.subr.bf16.mxu0 0
    %923 = vmatpush1.bf16.msra.mxu0 0
    %924 = vmatprep.subr.bf16.mxu0 0
    %925 = vmatpush1.bf16.msra.mxu0 0
    %926 = vmatprep.subr.bf16.mxu0 0
    %927 = vmatpush1.bf16.msra.mxu0 0
    %928 = vmatprep.mubr.bf16.mxu0 0
    %929 = vmatmul.mubr.bf16.gmra.mrb[0].mxu0 %v894
    %v930 = vpop.f32.mrb[0].mxu0
    %v931 = vadd.f32 0.0, %v930
    %v932 = vpop.f32.mrb[0].mxu0
    %v933 = vpop.f32.mrb[0].mxu0
    %v934 = vpop.f32.mrb[0].mxu0
    %935 = vdwg.mxu0
    %937 = vrot.lane.b32.xlu0 %v888, 32
    %v938 = vpop.permute.xlu0 %937
    %v940 = vsel %vm204, %v938, 0
    %942 = vmatprep.subr.bf16.mxu0 0
    %943 = vmatpush1.bf16.msra.mxu0 %v346
    %944 = vmatprep.subr.bf16.mxu0 0
    %945 = vmatpush1.bf16.msra.mxu0 %v347
    %946 = vmatprep.subr.bf16.mxu0 0
    %947 = vmatpush1.bf16.msra.mxu0 0
    %948 = vmatprep.subr.bf16.mxu0 0
    %949 = vmatpush1.bf16.msra.mxu0 0
    %950 = vmatprep.subr.bf16.mxu0 0
    %951 = vmatpush1.bf16.msra.mxu0 0
    %952 = vmatprep.subr.bf16.mxu0 0
    %953 = vmatpush1.bf16.msra.mxu0 0
    %954 = vmatprep.subr.bf16.mxu0 0
    %955 = vmatpush1.bf16.msra.mxu0 0
    %956 = vmatprep.subr.bf16.mxu0 0
    %957 = vmatpush1.bf16.msra.mxu0 0
    %958 = vmatprep.subr.bf16.mxu0 0
    %959 = vmatpush1.bf16.msra.mxu0 0
    %960 = vmatprep.subr.bf16.mxu0 0
    %961 = vmatpush1.bf16.msra.mxu0 0
    %962 = vmatprep.subr.bf16.mxu0 0
    %963 = vmatpush1.bf16.msra.mxu0 0
    %964 = vmatprep.subr.bf16.mxu0 0
    %965 = vmatpush1.bf16.msra.mxu0 0
    %966 = vmatprep.subr.bf16.mxu0 0
    %967 = vmatpush1.bf16.msra.mxu0 0
    %968 = vmatprep.subr.bf16.mxu0 0
    %969 = vmatpush1.bf16.msra.mxu0 0
    %970 = vmatprep.subr.bf16.mxu0 0
    %971 = vmatpush1.bf16.msra.mxu0 0
    %972 = vmatprep.subr.bf16.mxu0 0
    %973 = vmatpush1.bf16.msra.mxu0 0
    %974 = vmatprep.mubr.bf16.mxu0 0
    %975 = vmatmul.mubr.bf16.gmra.mrb[0].mxu0 %v940
    %v976 = vpop.f32.mrb[0].mxu0
    %v977 = vadd.f32 %v931, %v976
    %v978 = vpop.f32.mrb[0].mxu0
    %v979 = vpop.f32.mrb[0].mxu0
    %v980 = vpop.f32.mrb[0].mxu0
    %981 = vdwg.mxu0
    %v982 = vadd.f32 %v977, %v172
    %v983 = vxor.u32 %v982, 2147483648
    %v984 = vmul.f32 %v983, 1.442695
    %v985 = vpow.pop %v984
    %v986 = vadd.f32 %v985, 1.0
    %v987 = vrcp.pop %v986
    %v988 = vmul.f32 1.0, %v987
    %v989 = vtanh.pop %v982
    %v990 = vmul.f32 %v988, %v805
    %992 = vrot.lane.b32.xlu0 %v989, 64
    %v993 = vpop.permute.xlu0 %992
    %v995 = vmul.f32 %v988, %v993
    %997 = vrot.lane.b32.xlu0 %v995, 32
    %v998 = vpop.permute.xlu0 %997
    %v1000 = vadd.f32 %v990, %v998
    %v1001 = vtanh.pop %v1000
    %1003 = vrot.lane.b32.xlu0 %v1001, 64
    %v1004 = vpop.permute.xlu0 %1003
    %v1006 = vmul.f32 %v988, %v1004
    %s1007 = sld [smem:[#allocation3 + $0x4]]
    %s1008 = scalar_lea.vmem [#allocation7], %s1007
    %v1009 = vld [vmem:[%s1008] sm:$0x1]
    %s1010 = sld [smem:[#allocation3 + $0x84]]
    %s1011 = scalar_lea.vmem [#allocation7], %s1010
    %v1012 = vld [vmem:[%s1011] sm:$0x1]
    %v1014 = vrot.slane %v1012, 7
    %v1016 = vsel %vm189, %v1009, %v1014
    %1017 = vmatprep.subr.bf16.mxu0 0
    %1018 = vmatpush1.bf16.msra.mxu0 %v200
    %1019 = vmatprep.subr.bf16.mxu0 0
    %1020 = vmatpush1.bf16.msra.mxu0 %v201
    %1021 = vmatprep.subr.bf16.mxu0 0
    %1022 = vmatpush1.bf16.msra.mxu0 0
    %1023 = vmatprep.subr.bf16.mxu0 0
    %1024 = vmatpush1.bf16.msra.mxu0 0
    %1025 = vmatprep.subr.bf16.mxu0 0
    %1026 = vmatpush1.bf16.msra.mxu0 0
    %1027 = vmatprep.subr.bf16.mxu0 0
    %1028 = vmatpush1.bf16.msra.mxu0 0
    %1029 = vmatprep.subr.bf16.mxu0 0
    %1030 = vmatpush1.bf16.msra.mxu0 0
    %1031 = vmatprep.subr.bf16.mxu0 0
    %1032 = vmatpush1.bf16.msra.mxu0 0
    %1033 = vmatprep.subr.bf16.mxu0 0
    %1034 = vmatpush1.bf16.msra.mxu0 0
    %1035 = vmatprep.subr.bf16.mxu0 0
    %1036 = vmatpush1.bf16.msra.mxu0 0
    %1037 = vmatprep.subr.bf16.mxu0 0
    %1038 = vmatpush1.bf16.msra.mxu0 0
    %1039 = vmatprep.subr.bf16.mxu0 0
    %1040 = vmatpush1.bf16.msra.mxu0 0
    %1041 = vmatprep.subr.bf16.mxu0 0
    %1042 = vmatpush1.bf16.msra.mxu0 0
    %1043 = vmatprep.subr.bf16.mxu0 0
    %1044 = vmatpush1.bf16.msra.mxu0 0
    %1045 = vmatprep.subr.bf16.mxu0 0
    %1046 = vmatpush1.bf16.msra.mxu0 0
    %1047 = vmatprep.subr.bf16.mxu0 0
    %1048 = vmatpush1.bf16.msra.mxu0 0
    %1049 = vmatprep.mubr.bf16.mxu0 0
    %1050 = vmatmul.mubr.bf16.gmra.mrb[0].mxu0 %v940
    %v1051 = vpop.f32.mrb[0].mxu0
    %v1052 = vadd.f32 0.0, %v1051
    %v1053 = vpop.f32.mrb[0].mxu0
    %v1054 = vpop.f32.mrb[0].mxu0
    %v1055 = vpop.f32.mrb[0].mxu0
    %1056 = vdwg.mxu0
    %v1057 = vadd.f32 %v1016, %v1052
    %v1058 = vadd.f32 %v1057, %v165
    %v1059 = vxor.u32 %v1058, 2147483648
    %v1060 = vmul.f32 %v1059, 1.442695
    %v1061 = vpow.pop %v1060
    %v1062 = vadd.f32 %v1061, 1.0
    %v1063 = vrcp.pop %v1062
    %v1064 = vmul.f32 1.0, %v1063
    %v1065 = vtanh.pop %v1058
    %v1066 = vmul.f32 %v1064, %v881
    %1068 = vrot.lane.b32.xlu0 %v1065, 64
    %v1069 = vpop.permute.xlu0 %1068
    %v1071 = vmul.f32 %v1064, %v1069
    %1073 = vrot.lane.b32.xlu0 %v1071, 32
    %v1074 = vpop.permute.xlu0 %1073
    %v1076 = vadd.f32 %v1066, %v1074
    %v1077 = vtanh.pop %v1076
    %1079 = vrot.lane.b32.xlu0 %v1077, 64
    %v1080 = vpop.permute.xlu0 %1079
    %v1082 = vmul.f32 %v1064, %v1080
    %v1083 = vpack.c.bf16 %v1082, %v1082
    %v1084 = vpack.c.bf16 %v1006, %v1006
    %1086 = vrot.lane.b32.xlu0 %v1084, 32
    %v1087 = vpop.permute.xlu0 %1086
    %v1089 = vsel %vm204, %v1087, 0
    %1091 = vmatprep.subr.bf16.mxu0 0
    %1092 = vmatpush1.bf16.msra.mxu0 %v288
    %1093 = vmatprep.subr.bf16.mxu0 0
    %1094 = vmatpush1.bf16.msra.mxu0 %v289
    %1095 = vmatprep.subr.bf16.mxu0 0
    %1096 = vmatpush1.bf16.msra.mxu0 0
    %1097 = vmatprep.subr.bf16.mxu0 0
    %1098 = vmatpush1.bf16.msra.mxu0 0
    %1099 = vmatprep.subr.bf16.mxu0 0
    %1100 = vmatpush1.bf16.msra.mxu0 0
    %1101 = vmatprep.subr.bf16.mxu0 0
    %1102 = vmatpush1.bf16.msra.mxu0 0
    %1103 = vmatprep.subr.bf16.mxu0 0
    %1104 = vmatpush1.bf16.msra.mxu0 0
    %1105 = vmatprep.subr.bf16.mxu0 0
    %1106 = vmatpush1.bf16.msra.mxu0 0
    %1107 = vmatprep.subr.bf16.mxu0 0
    %1108 = vmatpush1.bf16.msra.mxu0 0
    %1109 = vmatprep.subr.bf16.mxu0 0
    %1110 = vmatpush1.bf16.msra.mxu0 0
    %1111 = vmatprep.subr.bf16.mxu0 0
    %1112 = vmatpush1.bf16.msra.mxu0 0
    %1113 = vmatprep.subr.bf16.mxu0 0
    %1114 = vmatpush1.bf16.msra.mxu0 0
    %1115 = vmatprep.subr.bf16.mxu0 0
    %1116 = vmatpush1.bf16.msra.mxu0 0
    %1117 = vmatprep.subr.bf16.mxu0 0
    %1118 = vmatpush1.bf16.msra.mxu0 0
    %1119 = vmatprep.subr.bf16.mxu0 0
    %1120 = vmatpush1.bf16.msra.mxu0 0
    %1121 = vmatprep.subr.bf16.mxu0 0
    %1122 = vmatpush1.bf16.msra.mxu0 0
    %1123 = vmatprep.mubr.bf16.mxu0 0
    %1124 = vmatmul.mubr.bf16.gmra.mrb[0].mxu0 %v1089
    %v1125 = vpop.f32.mrb[0].mxu0
    %v1126 = vadd.f32 0.0, %v1125
    %v1127 = vpop.f32.mrb[0].mxu0
    %v1128 = vpop.f32.mrb[0].mxu0
    %v1129 = vpop.f32.mrb[0].mxu0
    %1130 = vdwg.mxu0
    %1132 = vrot.lane.b32.xlu0 %v1083, 32
    %v1133 = vpop.permute.xlu0 %1132
    %v1135 = vsel %vm204, %v1133, 0
    %1137 = vmatprep.subr.bf16.mxu0 0
    %1138 = vmatpush1.bf16.msra.mxu0 %v346
    %1139 = vmatprep.subr.bf16.mxu0 0
    %1140 = vmatpush1.bf16.msra.mxu0 %v347
    %1141 = vmatprep.subr.bf16.mxu0 0
    %1142 = vmatpush1.bf16.msra.mxu0 0
    %1143 = vmatprep.subr.bf16.mxu0 0
    %1144 = vmatpush1.bf16.msra.mxu0 0
    %1145 = vmatprep.subr.bf16.mxu0 0
    %1146 = vmatpush1.bf16.msra.mxu0 0
    %1147 = vmatprep.subr.bf16.mxu0 0
    %1148 = vmatpush1.bf16.msra.mxu0 0
    %1149 = vmatprep.subr.bf16.mxu0 0
    %1150 = vmatpush1.bf16.msra.mxu0 0
    %1151 = vmatprep.subr.bf16.mxu0 0
    %1152 = vmatpush1.bf16.msra.mxu0 0
    %1153 = vmatprep.subr.bf16.mxu0 0
    %1154 = vmatpush1.bf16.msra.mxu0 0
    %1155 = vmatprep.subr.bf16.mxu0 0
    %1156 = vmatpush1.bf16.msra.mxu0 0
    %1157 = vmatprep.subr.bf16.mxu0 0
    %1158 = vmatpush1.bf16.msra.mxu0 0
    %1159 = vmatprep.subr.bf16.mxu0 0
    %1160 = vmatpush1.bf16.msra.mxu0 0
    %1161 = vmatprep.subr.bf16.mxu0 0
    %1162 = vmatpush1.bf16.msra.mxu0 0
    %1163 = vmatprep.subr.bf16.mxu0 0
    %1164 = vmatpush1.bf16.msra.mxu0 0
    %1165 = vmatprep.subr.bf16.mxu0 0
    %1166 = vmatpush1.bf16.msra.mxu0 0
    %1167 = vmatprep.subr.bf16.mxu0 0
    %1168 = vmatpush1.bf16.msra.mxu0 0
    %1169 = vmatprep.mubr.bf16.mxu0 0
    %1170 = vmatmul.mubr.bf16.gmra.mrb[0].mxu0 %v1135
    %v1171 = vpop.f32.mrb[0].mxu0
    %v1172 = vadd.f32 %v1126, %v1171
    %v1173 = vpop.f32.mrb[0].mxu0
    %v1174 = vpop.f32.mrb[0].mxu0
    %v1175 = vpop.f32.mrb[0].mxu0
    %1176 = vdwg.mxu0
    %v1177 = vadd.f32 %v1172, %v172
    %v1178 = vxor.u32 %v1177, 2147483648
    %v1179 = vmul.f32 %v1178, 1.442695
    %v1180 = vpow.pop %v1179
    %v1181 = vadd.f32 %v1180, 1.0
    %v1182 = vrcp.pop %v1181
    %v1183 = vmul.f32 1.0, %v1182
    %v1184 = vtanh.pop %v1177
    %v1185 = vmul.f32 %v1183, %v1000
    %1187 = vrot.lane.b32.xlu0 %v1184, 64
    %v1188 = vpop.permute.xlu0 %1187
    %v1190 = vmul.f32 %v1183, %v1188
    %1192 = vrot.lane.b32.xlu0 %v1190, 32
    %v1193 = vpop.permute.xlu0 %1192
    %v1195 = vadd.f32 %v1185, %v1193
    %v1196 = vtanh.pop %v1195
    %1198 = vrot.lane.b32.xlu0 %v1196, 64
    %v1199 = vpop.permute.xlu0 %1198
    %v1201 = vmul.f32 %v1183, %v1199
    %s1202 = sld [smem:[#allocation3 + $0x5]]
    %s1203 = scalar_lea.vmem [#allocation7], %s1202
    %v1204 = vld [vmem:[%s1203] sm:$0x1]
    %s1205 = sld [smem:[#allocation3 + $0x85]]
    %s1206 = scalar_lea.vmem [#allocation7], %s1205
    %v1207 = vld [vmem:[%s1206] sm:$0x1]
    %v1209 = vrot.slane %v1207, 7
    %v1211 = vsel %vm189, %v1204, %v1209
    %1212 = vmatprep.subr.bf16.mxu0 0
    %1213 = vmatpush1.bf16.msra.mxu0 %v200
    %1214 = vmatprep.subr.bf16.mxu0 0
    %1215 = vmatpush1.bf16.msra.mxu0 %v201
    %1216 = vmatprep.subr.bf16.mxu0 0
    %1217 = vmatpush1.bf16.msra.mxu0 0
    %1218 = vmatprep.subr.bf16.mxu0 0
    %1219 = vmatpush1.bf16.msra.mxu0 0
    %1220 = vmatprep.subr.bf16.mxu0 0
    %1221 = vmatpush1.bf16.msra.mxu0 0
    %1222 = vmatprep.subr.bf16.mxu0 0
    %1223 = vmatpush1.bf16.msra.mxu0 0
    %1224 = vmatprep.subr.bf16.mxu0 0
    %1225 = vmatpush1.bf16.msra.mxu0 0
    %1226 = vmatprep.subr.bf16.mxu0 0
    %1227 = vmatpush1.bf16.msra.mxu0 0
    %1228 = vmatprep.subr.bf16.mxu0 0
    %1229 = vmatpush1.bf16.msra.mxu0 0
    %1230 = vmatprep.subr.bf16.mxu0 0
    %1231 = vmatpush1.bf16.msra.mxu0 0
    %1232 = vmatprep.subr.bf16.mxu0 0
    %1233 = vmatpush1.bf16.msra.mxu0 0
    %1234 = vmatprep.subr.bf16.mxu0 0
    %1235 = vmatpush1.bf16.msra.mxu0 0
    %1236 = vmatprep.subr.bf16.mxu0 0
    %1237 = vmatpush1.bf16.msra.mxu0 0
    %1238 = vmatprep.subr.bf16.mxu0 0
    %1239 = vmatpush1.bf16.msra.mxu0 0
    %1240 = vmatprep.subr.bf16.mxu0 0
    %1241 = vmatpush1.bf16.msra.mxu0 0
    %1242 = vmatprep.subr.bf16.mxu0 0
    %1243 = vmatpush1.bf16.msra.mxu0 0
    %1244 = vmatprep.mubr.bf16.mxu0 0
    %1245 = vmatmul.mubr.bf16.gmra.mrb[0].mxu0 %v1135
    %v1246 = vpop.f32.mrb[0].mxu0
    %v1247 = vadd.f32 0.0, %v1246
    %v1248 = vpop.f32.mrb[0].mxu0
    %v1249 = vpop.f32.mrb[0].mxu0
    %v1250 = vpop.f32.mrb[0].mxu0
    %1251 = vdwg.mxu0
    %v1252 = vadd.f32 %v1211, %v1247
    %v1253 = vadd.f32 %v1252, %v165
    %v1254 = vxor.u32 %v1253, 2147483648
    %v1255 = vmul.f32 %v1254, 1.442695
    %v1256 = vpow.pop %v1255
    %v1257 = vadd.f32 %v1256, 1.0
    %v1258 = vrcp.pop %v1257
    %v1259 = vmul.f32 1.0, %v1258
    %v1260 = vtanh.pop %v1253
    %v1261 = vmul.f32 %v1259, %v1076
    %1263 = vrot.lane.b32.xlu0 %v1260, 64
    %v1264 = vpop.permute.xlu0 %1263
    %v1266 = vmul.f32 %v1259, %v1264
    %1268 = vrot.lane.b32.xlu0 %v1266, 32
    %v1269 = vpop.permute.xlu0 %1268
    %v1271 = vadd.f32 %v1261, %v1269
    %v1272 = vtanh.pop %v1271
    %1274 = vrot.lane.b32.xlu0 %v1272, 64
    %v1275 = vpop.permute.xlu0 %1274
    %v1277 = vmul.f32 %v1259, %v1275
    %v1278 = vpack.c.bf16 %v1277, %v1277
    %v1279 = vpack.c.bf16 %v1201, %v1201
    %1281 = vrot.lane.b32.xlu0 %v1279, 32
    %v1282 = vpop.permute.xlu0 %1281
    %v1284 = vsel %vm204, %v1282, 0
    %1286 = vmatprep.subr.bf16.mxu0 0
    %1287 = vmatpush1.bf16.msra.mxu0 %v288
    %1288 = vmatprep.subr.bf16.mxu0 0
    %1289 = vmatpush1.bf16.msra.mxu0 %v289
    %1290 = vmatprep.subr.bf16.mxu0 0
    %1291 = vmatpush1.bf16.msra.mxu0 0
    %1292 = vmatprep.subr.bf16.mxu0 0
    %1293 = vmatpush1.bf16.msra.mxu0 0
    %1294 = vmatprep.subr.bf16.mxu0 0
    %1295 = vmatpush1.bf16.msra.mxu0 0
    %1296 = vmatprep.subr.bf16.mxu0 0
    %1297 = vmatpush1.bf16.msra.mxu0 0
    %1298 = vmatprep.subr.bf16.mxu0 0
    %1299 = vmatpush1.bf16.msra.mxu0 0
    %1300 = vmatprep.subr.bf16.mxu0 0
    %1301 = vmatpush1.bf16.msra.mxu0 0
    %1302 = vmatprep.subr.bf16.mxu0 0
    %1303 = vmatpush1.bf16.msra.mxu0 0
    %1304 = vmatprep.subr.bf16.mxu0 0
    %1305 = vmatpush1.bf16.msra.mxu0 0
    %1306 = vmatprep.subr.bf16.mxu0 0
    %1307 = vmatpush1.bf16.msra.mxu0 0
    %1308 = vmatprep.subr.bf16.mxu0 0
    %1309 = vmatpush1.bf16.msra.mxu0 0
    %1310 = vmatprep.subr.bf16.mxu0 0
    %1311 = vmatpush1.bf16.msra.mxu0 0
    %1312 = vmatprep.subr.bf16.mxu0 0
    %1313 = vmatpush1.bf16.msra.mxu0 0
    %1314 = vmatprep.subr.bf16.mxu0 0
    %1315 = vmatpush1.bf16.msra.mxu0 0
    %1316 = vmatprep.subr.bf16.mxu0 0
    %1317 = vmatpush1.bf16.msra.mxu0 0
    %1318 = vmatprep.mubr.bf16.mxu0 0
    %1319 = vmatmul.mubr.bf16.gmra.mrb[0].mxu0 %v1284
    %v1320 = vpop.f32.mrb[0].mxu0
    %v1321 = vadd.f32 0.0, %v1320
    %v1322 = vpop.f32.mrb[0].mxu0
    %v1323 = vpop.f32.mrb[0].mxu0
    %v1324 = vpop.f32.mrb[0].mxu0
    %1325 = vdwg.mxu0
    %1327 = vrot.lane.b32.xlu0 %v1278, 32
    %v1328 = vpop.permute.xlu0 %1327
    %v1330 = vsel %vm204, %v1328, 0
    %1332 = vmatprep.subr.bf16.mxu0 0
    %1333 = vmatpush1.bf16.msra.mxu0 %v346
    %1334 = vmatprep.subr.bf16.mxu0 0
    %1335 = vmatpush1.bf16.msra.mxu0 %v347
    %1336 = vmatprep.subr.bf16.mxu0 0
    %1337 = vmatpush1.bf16.msra.mxu0 0
    %1338 = vmatprep.subr.bf16.mxu0 0
    %1339 = vmatpush1.bf16.msra.mxu0 0
    %1340 = vmatprep.subr.bf16.mxu0 0
    %1341 = vmatpush1.bf16.msra.mxu0 0
    %1342 = vmatprep.subr.bf16.mxu0 0
    %1343 = vmatpush1.bf16.msra.mxu0 0
    %1344 = vmatprep.subr.bf16.mxu0 0
    %1345 = vmatpush1.bf16.msra.mxu0 0
    %1346 = vmatprep.subr.bf16.mxu0 0
    %1347 = vmatpush1.bf16.msra.mxu0 0
    %1348 = vmatprep.subr.bf16.mxu0 0
    %1349 = vmatpush1.bf16.msra.mxu0 0
    %1350 = vmatprep.subr.bf16.mxu0 0
    %1351 = vmatpush1.bf16.msra.mxu0 0
    %1352 = vmatprep.subr.bf16.mxu0 0
    %1353 = vmatpush1.bf16.msra.mxu0 0
    %1354 = vmatprep.subr.bf16.mxu0 0
    %1355 = vmatpush1.bf16.msra.mxu0 0
    %1356 = vmatprep.subr.bf16.mxu0 0
    %1357 = vmatpush1.bf16.msra.mxu0 0
    %1358 = vmatprep.subr.bf16.mxu0 0
    %1359 = vmatpush1.bf16.msra.mxu0 0
    %1360 = vmatprep.subr.bf16.mxu0 0
    %1361 = vmatpush1.bf16.msra.mxu0 0
    %1362 = vmatprep.subr.bf16.mxu0 0
    %1363 = vmatpush1.bf16.msra.mxu0 0
    %1364 = vmatprep.mubr.bf16.mxu0 0
    %1365 = vmatmul.mubr.bf16.gmra.mrb[0].mxu0 %v1330
    %v1366 = vpop.f32.mrb[0].mxu0
    %v1367 = vadd.f32 %v1321, %v1366
    %v1368 = vpop.f32.mrb[0].mxu0
    %v1369 = vpop.f32.mrb[0].mxu0
    %v1370 = vpop.f32.mrb[0].mxu0
    %1371 = vdwg.mxu0
    %v1372 = vadd.f32 %v1367, %v172
    %v1373 = vxor.u32 %v1372, 2147483648
    %v1374 = vmul.f32 %v1373, 1.442695
    %v1375 = vpow.pop %v1374
    %v1376 = vadd.f32 %v1375, 1.0
    %v1377 = vrcp.pop %v1376
    %v1378 = vmul.f32 1.0, %v1377
    %v1379 = vtanh.pop %v1372
    %v1380 = vmul.f32 %v1378, %v1195
    %1382 = vrot.lane.b32.xlu0 %v1379, 64
    %v1383 = vpop.permute.xlu0 %1382
    %v1385 = vmul.f32 %v1378, %v1383
    %1387 = vrot.lane.b32.xlu0 %v1385, 32
    %v1388 = vpop.permute.xlu0 %1387
    %v1390 = vadd.f32 %v1380, %v1388
    %v1391 = vtanh.pop %v1390
    %1393 = vrot.lane.b32.xlu0 %v1391, 64
    %v1394 = vpop.permute.xlu0 %1393
    %v1396 = vmul.f32 %v1378, %v1394
    %s1397 = sld [smem:[#allocation3 + $0x6]]
    %s1398 = scalar_lea.vmem [#allocation7], %s1397
    %v1399 = vld [vmem:[%s1398] sm:$0x1]
    %s1400 = sld [smem:[#allocation3 + $0x86]]
    %s1401 = scalar_lea.vmem [#allocation7], %s1400
    %v1402 = vld [vmem:[%s1401] sm:$0x1]
    %v1404 = vrot.slane %v1402, 7
    %v1406 = vsel %vm189, %v1399, %v1404
    %1407 = vmatprep.subr.bf16.mxu0 0
    %1408 = vmatpush1.bf16.msra.mxu0 %v200
    %1409 = vmatprep.subr.bf16.mxu0 0
    %1410 = vmatpush1.bf16.msra.mxu0 %v201
    %1411 = vmatprep.subr.bf16.mxu0 0
    %1412 = vmatpush1.bf16.msra.mxu0 0
    %1413 = vmatprep.subr.bf16.mxu0 0
    %1414 = vmatpush1.bf16.msra.mxu0 0
    %1415 = vmatprep.subr.bf16.mxu0 0
    %1416 = vmatpush1.bf16.msra.mxu0 0
    %1417 = vmatprep.subr.bf16.mxu0 0
    %1418 = vmatpush1.bf16.msra.mxu0 0
    %1419 = vmatprep.subr.bf16.mxu0 0
    %1420 = vmatpush1.bf16.msra.mxu0 0
    %1421 = vmatprep.subr.bf16.mxu0 0
    %1422 = vmatpush1.bf16.msra.mxu0 0
    %1423 = vmatprep.subr.bf16.mxu0 0
    %1424 = vmatpush1.bf16.msra.mxu0 0
    %1425 = vmatprep.subr.bf16.mxu0 0
    %1426 = vmatpush1.bf16.msra.mxu0 0
    %1427 = vmatprep.subr.bf16.mxu0 0
    %1428 = vmatpush1.bf16.msra.mxu0 0
    %1429 = vmatprep.subr.bf16.mxu0 0
    %1430 = vmatpush1.bf16.msra.mxu0 0
    %1431 = vmatprep.subr.bf16.mxu0 0
    %1432 = vmatpush1.bf16.msra.mxu0 0
    %1433 = vmatprep.subr.bf16.mxu0 0
    %1434 = vmatpush1.bf16.msra.mxu0 0
    %1435 = vmatprep.subr.bf16.mxu0 0
    %1436 = vmatpush1.bf16.msra.mxu0 0
    %1437 = vmatprep.subr.bf16.mxu0 0
    %1438 = vmatpush1.bf16.msra.mxu0 0
    %1439 = vmatprep.mubr.bf16.mxu0 0
    %1440 = vmatmul.mubr.bf16.gmra.mrb[0].mxu0 %v1330
    %v1441 = vpop.f32.mrb[0].mxu0
    %v1442 = vadd.f32 0.0, %v1441
    %v1443 = vpop.f32.mrb[0].mxu0
    %v1444 = vpop.f32.mrb[0].mxu0
    %v1445 = vpop.f32.mrb[0].mxu0
    %1446 = vdwg.mxu0
    %v1447 = vadd.f32 %v1406, %v1442
    %v1448 = vadd.f32 %v1447, %v165
    %v1449 = vxor.u32 %v1448, 2147483648
    %v1450 = vmul.f32 %v1449, 1.442695
    %v1451 = vpow.pop %v1450
    %v1452 = vadd.f32 %v1451, 1.0
    %v1453 = vrcp.pop %v1452
    %v1454 = vmul.f32 1.0, %v1453
    %v1455 = vtanh.pop %v1448
    %v1456 = vmul.f32 %v1454, %v1271
    %1458 = vrot.lane.b32.xlu0 %v1455, 64
    %v1459 = vpop.permute.xlu0 %1458
    %v1461 = vmul.f32 %v1454, %v1459
    %1463 = vrot.lane.b32.xlu0 %v1461, 32
    %v1464 = vpop.permute.xlu0 %1463
    %v1466 = vadd.f32 %v1456, %v1464
    %v1467 = vtanh.pop %v1466
    %1469 = vrot.lane.b32.xlu0 %v1467, 64
    %v1470 = vpop.permute.xlu0 %1469
    %v1472 = vmul.f32 %v1454, %v1470
    %v1473 = vpack.c.bf16 %v1472, %v1472
    %v1474 = vpack.c.bf16 %v1396, %v1396
    %1476 = vrot.lane.b32.xlu0 %v1474, 32
    %v1477 = vpop.permute.xlu0 %1476
    %v1479 = vsel %vm204, %v1477, 0
    %1481 = vmatprep.subr.bf16.mxu0 0
    %1482 = vmatpush1.bf16.msra.mxu0 %v288
    %1483 = vmatprep.subr.bf16.mxu0 0
    %1484 = vmatpush1.bf16.msra.mxu0 %v289
    %1485 = vmatprep.subr.bf16.mxu0 0
    %1486 = vmatpush1.bf16.msra.mxu0 0
    %1487 = vmatprep.subr.bf16.mxu0 0
    %1488 = vmatpush1.bf16.msra.mxu0 0
    %1489 = vmatprep.subr.bf16.mxu0 0
    %1490 = vmatpush1.bf16.msra.mxu0 0
    %1491 = vmatprep.subr.bf16.mxu0 0
    %1492 = vmatpush1.bf16.msra.mxu0 0
    %1493 = vmatprep.subr.bf16.mxu0 0
    %1494 = vmatpush1.bf16.msra.mxu0 0
    %1495 = vmatprep.subr.bf16.mxu0 0
    %1496 = vmatpush1.bf16.msra.mxu0 0
    %1497 = vmatprep.subr.bf16.mxu0 0
    %1498 = vmatpush1.bf16.msra.mxu0 0
    %1499 = vmatprep.subr.bf16.mxu0 0
    %1500 = vmatpush1.bf16.msra.mxu0 0
    %1501 = vmatprep.subr.bf16.mxu0 0
    %1502 = vmatpush1.bf16.msra.mxu0 0
    %1503 = vmatprep.subr.bf16.mxu0 0
    %1504 = vmatpush1.bf16.msra.mxu0 0
    %1505 = vmatprep.subr.bf16.mxu0 0
    %1506 = vmatpush1.bf16.msra.mxu0 0
    %1507 = vmatprep.subr.bf16.mxu0 0
    %1508 = vmatpush1.bf16.msra.mxu0 0
    %1509 = vmatprep.subr.bf16.mxu0 0
    %1510 = vmatpush1.bf16.msra.mxu0 0
    %1511 = vmatprep.subr.bf16.mxu0 0
    %1512 = vmatpush1.bf16.msra.mxu0 0
    %1513 = vmatprep.mubr.bf16.mxu0 0
    %1514 = vmatmul.mubr.bf16.gmra.mrb[0].mxu0 %v1479
    %v1515 = vpop.f32.mrb[0].mxu0
    %v1516 = vadd.f32 0.0, %v1515
    %v1517 = vpop.f32.mrb[0].mxu0
    %v1518 = vpop.f32.mrb[0].mxu0
    %v1519 = vpop.f32.mrb[0].mxu0
    %1520 = vdwg.mxu0
    %1522 = vrot.lane.b32.xlu0 %v1473, 32
    %v1523 = vpop.permute.xlu0 %1522
    %v1525 = vsel %vm204, %v1523, 0
    %1527 = vmatprep.subr.bf16.mxu0 0
    %1528 = vmatpush1.bf16.msra.mxu0 %v346
    %1529 = vmatprep.subr.bf16.mxu0 0
    %1530 = vmatpush1.bf16.msra.mxu0 %v347
    %1531 = vmatprep.subr.bf16.mxu0 0
    %1532 = vmatpush1.bf16.msra.mxu0 0
    %1533 = vmatprep.subr.bf16.mxu0 0
    %1534 = vmatpush1.bf16.msra.mxu0 0
    %1535 = vmatprep.subr.bf16.mxu0 0
    %1536 = vmatpush1.bf16.msra.mxu0 0
    %1537 = vmatprep.subr.bf16.mxu0 0
    %1538 = vmatpush1.bf16.msra.mxu0 0
    %1539 = vmatprep.subr.bf16.mxu0 0
    %1540 = vmatpush1.bf16.msra.mxu0 0
    %1541 = vmatprep.subr.bf16.mxu0 0
    %1542 = vmatpush1.bf16.msra.mxu0 0
    %1543 = vmatprep.subr.bf16.mxu0 0
    %1544 = vmatpush1.bf16.msra.mxu0 0
    %1545 = vmatprep.subr.bf16.mxu0 0
    %1546 = vmatpush1.bf16.msra.mxu0 0
    %1547 = vmatprep.subr.bf16.mxu0 0
    %1548 = vmatpush1.bf16.msra.mxu0 0
    %1549 = vmatprep.subr.bf16.mxu0 0
    %1550 = vmatpush1.bf16.msra.mxu0 0
    %1551 = vmatprep.subr.bf16.mxu0 0
    %1552 = vmatpush1.bf16.msra.mxu0 0
    %1553 = vmatprep.subr.bf16.mxu0 0
    %1554 = vmatpush1.bf16.msra.mxu0 0
    %1555 = vmatprep.subr.bf16.mxu0 0
    %1556 = vmatpush1.bf16.msra.mxu0 0
    %1557 = vmatprep.subr.bf16.mxu0 0
    %1558 = vmatpush1.bf16.msra.mxu0 0
    %1559 = vmatprep.mubr.bf16.mxu0 0
    %1560 = vmatmul.mubr.bf16.gmra.mrb[0].mxu0 %v1525
    %v1561 = vpop.f32.mrb[0].mxu0
    %v1562 = vadd.f32 %v1516, %v1561
    %v1563 = vpop.f32.mrb[0].mxu0
    %v1564 = vpop.f32.mrb[0].mxu0
    %v1565 = vpop.f32.mrb[0].mxu0
    %1566 = vdwg.mxu0
    %v1567 = vadd.f32 %v1562, %v172
    %v1568 = vxor.u32 %v1567, 2147483648
    %v1569 = vmul.f32 %v1568, 1.442695
    %v1570 = vpow.pop %v1569
    %v1571 = vadd.f32 %v1570, 1.0
    %v1572 = vrcp.pop %v1571
    %v1573 = vmul.f32 1.0, %v1572
    %v1574 = vtanh.pop %v1567
    %v1575 = vmul.f32 %v1573, %v1390
    %1577 = vrot.lane.b32.xlu0 %v1574, 64
    %v1578 = vpop.permute.xlu0 %1577
    %v1580 = vmul.f32 %v1573, %v1578
    %1582 = vrot.lane.b32.xlu0 %v1580, 32
    %v1583 = vpop.permute.xlu0 %1582
    %v1585 = vadd.f32 %v1575, %v1583
    %v1586 = vtanh.pop %v1585
    %1588 = vrot.lane.b32.xlu0 %v1586, 64
    %v1589 = vpop.permute.xlu0 %1588
    %v1591 = vmul.f32 %v1573, %v1589
    %s1592 = sld [smem:[#allocation3 + $0x7]]
    %s1593 = scalar_lea.vmem [#allocation7], %s1592
    %v1594 = vld [vmem:[%s1593] sm:$0x1]
    %s1595 = sld [smem:[#allocation3 + $0x87]]
    %s1596 = scalar_lea.vmem [#allocation7], %s1595
    %v1597 = vld [vmem:[%s1596] sm:$0x1]
    %v1599 = vrot.slane %v1597, 7
    %v1601 = vsel %vm189, %v1594, %v1599
    %1602 = vmatprep.subr.bf16.mxu0 0
    %1603 = vmatpush1.bf16.msra.mxu0 %v200
    %1604 = vmatprep.subr.bf16.mxu0 0
    %1605 = vmatpush1.bf16.msra.mxu0 %v201
    %1606 = vmatprep.subr.bf16.mxu0 0
    %1607 = vmatpush1.bf16.msra.mxu0 0
    %1608 = vmatprep.subr.bf16.mxu0 0
    %1609 = vmatpush1.bf16.msra.mxu0 0
    %1610 = vmatprep.subr.bf16.mxu0 0
    %1611 = vmatpush1.bf16.msra.mxu0 0
    %1612 = vmatprep.subr.bf16.mxu0 0
    %1613 = vmatpush1.bf16.msra.mxu0 0
    %1614 = vmatprep.subr.bf16.mxu0 0
    %1615 = vmatpush1.bf16.msra.mxu0 0
    %1616 = vmatprep.subr.bf16.mxu0 0
    %1617 = vmatpush1.bf16.msra.mxu0 0
    %1618 = vmatprep.subr.bf16.mxu0 0
    %1619 = vmatpush1.bf16.msra.mxu0 0
    %1620 = vmatprep.subr.bf16.mxu0 0
    %1621 = vmatpush1.bf16.msra.mxu0 0
    %1622 = vmatprep.subr.bf16.mxu0 0
    %1623 = vmatpush1.bf16.msra.mxu0 0
    %1624 = vmatprep.subr.bf16.mxu0 0
    %1625 = vmatpush1.bf16.msra.mxu0 0
    %1626 = vmatprep.subr.bf16.mxu0 0
    %1627 = vmatpush1.bf16.msra.mxu0 0
    %1628 = vmatprep.subr.bf16.mxu0 0
    %1629 = vmatpush1.bf16.msra.mxu0 0
    %1630 = vmatprep.subr.bf16.mxu0 0
    %1631 = vmatpush1.bf16.msra.mxu0 0
    %1632 = vmatprep.subr.bf16.mxu0 0
    %1633 = vmatpush1.bf16.msra.mxu0 0
    %1634 = vmatprep.mubr.bf16.mxu0 0
    %1635 = vmatmul.mubr.bf16.gmra.mrb[0].mxu0 %v1525
    %v1636 = vpop.f32.mrb[0].mxu0
    %v1637 = vadd.f32 0.0, %v1636
    %v1638 = vpop.f32.mrb[0].mxu0
    %v1639 = vpop.f32.mrb[0].mxu0
    %v1640 = vpop.f32.mrb[0].mxu0
    %1641 = vdwg.mxu0
    %v1642 = vadd.f32 %v1601, %v1637
    %v1643 = vadd.f32 %v1642, %v165
    %v1644 = vxor.u32 %v1643, 2147483648
    %v1645 = vmul.f32 %v1644, 1.442695
    %v1646 = vpow.pop %v1645
    %v1647 = vadd.f32 %v1646, 1.0
    %v1648 = vrcp.pop %v1647
    %v1649 = vmul.f32 1.0, %v1648
    %v1650 = vtanh.pop %v1643
    %v1651 = vmul.f32 %v1649, %v1466
    %1653 = vrot.lane.b32.xlu0 %v1650, 64
    %v1654 = vpop.permute.xlu0 %1653
    %v1656 = vmul.f32 %v1649, %v1654
    %1658 = vrot.lane.b32.xlu0 %v1656, 32
    %v1659 = vpop.permute.xlu0 %1658
    %v1661 = vadd.f32 %v1651, %v1659
    %v1662 = vtanh.pop %v1661
    %1664 = vrot.lane.b32.xlu0 %v1662, 64
    %v1665 = vpop.permute.xlu0 %1664
    %v1667 = vmul.f32 %v1649, %v1665
    %v1668 = vpack.c.bf16 %v1667, %v1667
    %v1669 = vpack.c.bf16 %v1591, %v1591
    %1671 = vrot.lane.b32.xlu0 %v1669, 32
    %v1672 = vpop.permute.xlu0 %1671
    %v1674 = vsel %vm204, %v1672, 0
    %1676 = vmatprep.subr.bf16.mxu0 0
    %1677 = vmatpush1.bf16.msra.mxu0 %v288
    %1678 = vmatprep.subr.bf16.mxu0 0
    %1679 = vmatpush1.bf16.msra.mxu0 %v289
    %1680 = vmatprep.subr.bf16.mxu0 0
    %1681 = vmatpush1.bf16.msra.mxu0 0
    %1682 = vmatprep.subr.bf16.mxu0 0
    %1683 = vmatpush1.bf16.msra.mxu0 0
    %1684 = vmatprep.subr.bf16.mxu0 0
    %1685 = vmatpush1.bf16.msra.mxu0 0
    %1686 = vmatprep.subr.bf16.mxu0 0
    %1687 = vmatpush1.bf16.msra.mxu0 0
    %1688 = vmatprep.subr.bf16.mxu0 0
    %1689 = vmatpush1.bf16.msra.mxu0 0
    %1690 = vmatprep.subr.bf16.mxu0 0
    %1691 = vmatpush1.bf16.msra.mxu0 0
    %1692 = vmatprep.subr.bf16.mxu0 0
    %1693 = vmatpush1.bf16.msra.mxu0 0
    %1694 = vmatprep.subr.bf16.mxu0 0
    %1695 = vmatpush1.bf16.msra.mxu0 0
    %1696 = vmatprep.subr.bf16.mxu0 0
    %1697 = vmatpush1.bf16.msra.mxu0 0
    %1698 = vmatprep.subr.bf16.mxu0 0
    %1699 = vmatpush1.bf16.msra.mxu0 0
    %1700 = vmatprep.subr.bf16.mxu0 0
    %1701 = vmatpush1.bf16.msra.mxu0 0
    %1702 = vmatprep.subr.bf16.mxu0 0
    %1703 = vmatpush1.bf16.msra.mxu0 0
    %1704 = vmatprep.subr.bf16.mxu0 0
    %1705 = vmatpush1.bf16.msra.mxu0 0
    %1706 = vmatprep.subr.bf16.mxu0 0
    %1707 = vmatpush1.bf16.msra.mxu0 0
    %1708 = vmatprep.mubr.bf16.mxu0 0
    %1709 = vmatmul.mubr.bf16.gmra.mrb[0].mxu0 %v1674
    %v1710 = vpop.f32.mrb[0].mxu0
    %v1711 = vadd.f32 0.0, %v1710
    %v1712 = vpop.f32.mrb[0].mxu0
    %v1713 = vpop.f32.mrb[0].mxu0
    %v1714 = vpop.f32.mrb[0].mxu0
    %1715 = vdwg.mxu0
    %1717 = vrot.lane.b32.xlu0 %v1668, 32
    %v1718 = vpop.permute.xlu0 %1717
    %v1720 = vsel %vm204, %v1718, 0
    %1722 = vmatprep.subr.bf16.mxu0 0
    %1723 = vmatpush1.bf16.msra.mxu0 %v346
    %1724 = vmatprep.subr.bf16.mxu0 0
    %1725 = vmatpush1.bf16.msra.mxu0 %v347
    %1726 = vmatprep.subr.bf16.mxu0 0
    %1727 = vmatpush1.bf16.msra.mxu0 0
    %1728 = vmatprep.subr.bf16.mxu0 0
    %1729 = vmatpush1.bf16.msra.mxu0 0
    %1730 = vmatprep.subr.bf16.mxu0 0
    %1731 = vmatpush1.bf16.msra.mxu0 0
    %1732 = vmatprep.subr.bf16.mxu0 0
    %1733 = vmatpush1.bf16.msra.mxu0 0
    %1734 = vmatprep.subr.bf16.mxu0 0
    %1735 = vmatpush1.bf16.msra.mxu0 0
    %1736 = vmatprep.subr.bf16.mxu0 0
    %1737 = vmatpush1.bf16.msra.mxu0 0
    %1738 = vmatprep.subr.bf16.mxu0 0
    %1739 = vmatpush1.bf16.msra.mxu0 0
    %1740 = vmatprep.subr.bf16.mxu0 0
    %1741 = vmatpush1.bf16.msra.mxu0 0
    %1742 = vmatprep.subr.bf16.mxu0 0
    %1743 = vmatpush1.bf16.msra.mxu0 0
    %1744 = vmatprep.subr.bf16.mxu0 0
    %1745 = vmatpush1.bf16.msra.mxu0 0
    %1746 = vmatprep.subr.bf16.mxu0 0
    %1747 = vmatpush1.bf16.msra.mxu0 0
    %1748 = vmatprep.subr.bf16.mxu0 0
    %1749 = vmatpush1.bf16.msra.mxu0 0
    %1750 = vmatprep.subr.bf16.mxu0 0
    %1751 = vmatpush1.bf16.msra.mxu0 0
    %1752 = vmatprep.subr.bf16.mxu0 0
    %1753 = vmatpush1.bf16.msra.mxu0 0
    %1754 = vmatprep.mubr.bf16.mxu0 0
    %1755 = vmatmul.mubr.bf16.gmra.mrb[0].mxu0 %v1720
    %v1756 = vpop.f32.mrb[0].mxu0
    %v1757 = vadd.f32 %v1711, %v1756
    %v1758 = vpop.f32.mrb[0].mxu0
    %v1759 = vpop.f32.mrb[0].mxu0
    %v1760 = vpop.f32.mrb[0].mxu0
    %1761 = vdwg.mxu0
    %v1762 = vadd.f32 %v1757, %v172
    %v1763 = vxor.u32 %v1762, 2147483648
    %v1764 = vmul.f32 %v1763, 1.442695
    %v1765 = vpow.pop %v1764
    %v1766 = vadd.f32 %v1765, 1.0
    %v1767 = vrcp.pop %v1766
    %v1768 = vmul.f32 1.0, %v1767
    %v1769 = vtanh.pop %v1762
    %v1770 = vmul.f32 %v1768, %v1585
    %1772 = vrot.lane.b32.xlu0 %v1769, 64
    %v1773 = vpop.permute.xlu0 %1772
    %v1775 = vmul.f32 %v1768, %v1773
    %1777 = vrot.lane.b32.xlu0 %v1775, 32
    %v1778 = vpop.permute.xlu0 %1777
    %v1780 = vadd.f32 %v1770, %v1778
    %v1781 = vtanh.pop %v1780
    %1783 = vrot.lane.b32.xlu0 %v1781, 64
    %v1784 = vpop.permute.xlu0 %1783
    %v1786 = vmul.f32 %v1768, %v1784
    %v1787 = vld [vmem:[#allocation16] sm:$0x1]
    %v1789 = vlaneseq
    %v1790 = vshrl.u32 %v1789, 7
    %v1791 = vsub.s32 0, %v1790
    %v1792 = vrot.slane %v1787, %v1791
    %1793 = vrot.lane.b32.xlu0 %v1792, 96
    %v1794 = vpop.permute.xlu0 %1793
    %v1796 = vmul.f32 %v1786, %v1794
    %1798 = vrot.lane.b32.xlu0 %v1796, 32
    %v1799 = vpop.permute.xlu0 %1798
    %vm1801 = vcmask 254976
    %v1802 = vsel %vm1801, %v1799, 0.0
    %1803 = vadd.xlane.f32.xlu0 %v1802
    %v1804 = vpop.xlane.xlu0 %1803
    %v1805 = vld [vmem:[#allocation2] sm:$0x1]
    %v1807 = vlaneseq
    %v1808 = vshrl.u32 %v1807, 7
    %v1809 = vsub.s32 0, %v1808
    %v1810 = vrot.slane %v1805, %v1809
    %v1812 = vadd.f32 %v1804, %v1810
    %v1813 = vxor.u32 %v1812, 2147483648
    %v1814 = vmul.f32 %v1813, 1.442695
    %v1815 = vpow.pop %v1814
    %v1816 = vadd.f32 %v1815, 1.0
    %v1817 = vrcp.pop %v1816
    %v1818 = vmul.f32 1.0, %v1817
    %vm1819 = vcmask 1024
    %1820 = vst.msk [vmem:[%s11] sm:$0x3] %vm1819, %v1818
    %1822 = vrot.lane.b32.xlu0 %v1667, 32
    %v1823 = vpop.permute.xlu0 %1822
    %1825 = vst.msk [vmem:[#allocation17] sm:$0x3] %vm1801, %v1823
    %1827 = vrot.lane.b32.xlu0 %v1786, 32
    %v1828 = vpop.permute.xlu0 %1827
    %s1830 = scalar_lea.vmem [#allocation17], 2
    %1831 = vst.msk [vmem:[%s1830] sm:$0x3] %vm1801, %v1828
    %1833 = vrot.lane.b32.xlu0 %v1661, 96
    %v1834 = vpop.permute.xlu0 %1833
    %1836 = vst.msk [vmem:[#allocation18] sm:$0x3] %vm1801, %v1834
    %1838 = vrot.lane.b32.xlu0 %v1780, 96
    %v1839 = vpop.permute.xlu0 %1838
    %s1841 = scalar_lea.vmem [#allocation18], 2
    %1842 = vst.msk [vmem:[%s1841] sm:$0x3] %vm1801, %v1839
    // Predicated region
    $region78: #{sentiment_lstm_forward.1} parent=1 // pred_check
      _
    $region79: #{sentiment_lstm_forward.1} parent=1 // pred_check_branch
      %1844 = sbr.rel (0) target = $region81
    $region80: #{sentiment_lstm_forward.1} parent=1 // pred_region
      _
    $region81: #{sentiment_lstm_forward.1} parent=1 // pred_fallthru
      _
    // Predicated region
    $region82: #{sentiment_lstm_forward.1} parent=1 // pred_check
      _
    $region83: #{sentiment_lstm_forward.1} parent=1 // pred_check_branch
      %1846 = sbr.rel (0) target = $region85
    $region84: #{sentiment_lstm_forward.1} parent=1 // pred_region
      %s1848 = ssub.s32 64, 64
      %1849 = vsyncadd [#allocation5], %s1848
      %s1850 = sshll.u32 [#allocation17], 4
      %s1851 = int_to_ptr.vmem [resolvable:$true] %s1850
      %1856 = dma.vmem_to_hbm [thread:$0]  %s1851, 64, %s12, [#allocation5], 32, 32, 2
    $region85: #{sentiment_lstm_forward.1} parent=1 // pred_fallthru
      _
    // Predicated region
    $region86: #{sentiment_lstm_forward.1} parent=1 // pred_check
      _
    $region87: #{sentiment_lstm_forward.1} parent=1 // pred_check_branch
      %1858 = sbr.rel (0) target = $region89
    $region88: #{sentiment_lstm_forward.1} parent=1 // pred_region
      %s1860 = ssub.s32 64, 64
      %1861 = vsyncadd [#allocation19], %s1860
      %s1862 = sshll.u32 [#allocation18], 4
      %s1863 = int_to_ptr.vmem [resolvable:$true] %s1862
      %1868 = dma.vmem_to_hbm [thread:$0]  %s1863, 64, %s13, [#allocation19], 32, 32, 2
    $region89: #{sentiment_lstm_forward.1} parent=1 // pred_fallthru
      _
    // Predicated region
    $region90: #{sentiment_lstm_forward.1} parent=1 // pred_check
      _
    $region91: #{sentiment_lstm_forward.1} parent=1 // pred_check_branch
      %1870 = sbr.rel (0) target = $region93
    $region92: #{sentiment_lstm_forward.1} parent=1 // pred_region
      _
    $region93: #{sentiment_lstm_forward.1} parent=1 // pred_fallthru
      _
    // Predicated region
    $region94: #{sentiment_lstm_forward.1} parent=1 // pred_check
      _
    $region95: #{sentiment_lstm_forward.1} parent=1 // pred_check_branch
      %1872 = sbr.rel (0) target = $region97
    $region96: #{sentiment_lstm_forward.1} parent=1 // pred_region
      %1873 = dma.done [#allocation5], 64
    $region97: #{sentiment_lstm_forward.1} parent=1 // pred_fallthru
      _
    // Predicated region
    $region98: #{sentiment_lstm_forward.1} parent=1 // pred_check
      _
    $region99: #{sentiment_lstm_forward.1} parent=1 // pred_check_branch
      %1875 = sbr.rel (0) target = $region101
    $region100: #{sentiment_lstm_forward.1} parent=1 // pred_region
      %1876 = dma.done [#allocation19], 64
    $region101: #{sentiment_lstm_forward.1} parent=1 // pred_fallthru
      _
    %1877 = vsyncpa [#allocation4], 1
    %1878 = vsyncpa [#allocation9], 1
    %1879 = vsyncpa [#allocation12], 1
    %1880 = vsyncpa [#allocation15], 1
    %1881 = vsyncpa [#allocation5], 1
    %1882 = vsyncpa [#allocation19], 1
    %1883 = vsyncpa [#allocation6], 1

</llo_original>
